<compile_context>
chip_gen: v6e
topology: v6e:2x2x1
jax: 0.10.0
libtpu: 0.0.40
codegen_flags: <defaults>
</compile_context>

<pallas_src>
import functools

import jax
import jax.numpy as jnp
import numpy as np
from jax.experimental import pallas as pl
from jax.experimental.pallas import tpu as pltpu


def decomp_kernel(s_ref, mask_ref, sel1_ref, sel2_ref, w_ref, b_ref, d_ref,
                  out_ref, *, E, H):
    """NB sentence pairs per grid step.

    s_ref    : (NB*Ltot, E) stacked embeddings; example n occupies rows
               [n*Ltot, (n+1)*Ltot): sentence1 (L1 rows) then sentence2 (L2 rows).
    mask_ref : (N, N)       additive mask: 0 on cross-sentence pairs within an example,
               -1e30 on same-sentence and cross-example pairs.
    sel1_ref : (NB, N)      0/1 block-diagonal selector summing each example's sentence1 rows.
    sel2_ref : (NB, N)      0/1 block-diagonal selector summing each example's sentence2 rows.
    w_ref    : (3E+4H, H)   packed [wt1; wt2; wp1a; wp1b; wp2; wd1a; wd1b]
    b_ref    : (4, H)       packed [bt1; bt2; bp1; bd1_adj]  (bp2*L folded into bd1_adj)
    d_ref    : (H+1, 128)   packed [wd2 padded to 128 lanes ; bd2 padded with -1e30]
    out_ref  : (1, NB, 128) lane-dense log-probabilities (first O lanes are real)
    """
    f32 = jnp.float32
    s = s_ref[...]                                            # (N, E)
    mask = mask_ref[...]                                      # (N, N)
    sel1 = sel1_ref[...]                                      # (NB, N)
    sel2 = sel2_ref[...]                                      # (NB, N)

    # ---- static, sublane-aligned views into the packed slabs (zero-cost for 8|E,H) ----
    o = 0
    wt1 = w_ref[o:o + E, :]; o += E
    wt2 = w_ref[o:o + H, :]; o += H
    wp1a = w_ref[o:o + E, :]; o += E
    wp1b = w_ref[o:o + E, :]; o += E
    wp2 = w_ref[o:o + H, :]; o += H
    wd1a = w_ref[o:o + H, :]; o += H
    wd1b = w_ref[o:o + H, :]; o += H

    bt1 = b_ref[0:1, :]
    bt2 = b_ref[1:2, :]
    bp1 = b_ref[2:3, :]
    bd1 = b_ref[3:4, :]                                       # bd1 + L1*bp2@wd1a + L2*bp2@wd1b

    wd2 = d_ref[0:H, :]                                       # (H, 128)
    bd2 = d_ref[H:H + 1, :]                                   # (1, 128)

    # ---- shared linear_transform on all stacked rows at once ----
    ht = jnp.maximum(jnp.dot(s, wt1, preferred_element_type=f32) + bt1, 0.0)
    t = jnp.dot(ht, wt2, preferred_element_type=f32) + bt2    # (N, H)

    # ---- all-pairs similarities in one matmul; constant additive mask removes
    #      same-sentence and cross-example pairs ----
    sims = jax.lax.dot_general(t, t, (((1,), (1,)), ((), ())),
                               preferred_element_type=f32) + mask   # (N, N)

    # row-softmax with the divide moved after the aggregation matmul (N divides, not N^2)
    m = jnp.max(sims, axis=1, keepdims=True)
    e = jnp.exp(sims - m)
    inv = 1.0 / jnp.sum(e, axis=1, keepdims=True)             # (N, 1)
    a = jnp.dot(e, s, preferred_element_type=f32) * inv       # (N, E) aligned features

    # ---- linear_pair layer 1 on cat((sent, align), 1); concat folded into split matmul ----
    hp = jnp.maximum(jnp.dot(s, wp1a, preferred_element_type=f32)
                     + jnp.dot(a, wp1b, preferred_element_type=f32) + bp1, 0.0)

    # ---- per-sentence sums via selector matmuls; wp2 applied AFTER the sum (linear fold),
    #      the L*bp2 contribution is folded into bd1_adj in the wrapper ----
    v1 = jnp.dot(jnp.dot(sel1, hp, preferred_element_type=f32), wp2,
                 preferred_element_type=f32)                  # (NB, H)
    v2 = jnp.dot(jnp.dot(sel2, hp, preferred_element_type=f32), wp2,
                 preferred_element_type=f32)                  # (NB, H)

    # ---- linear_decide on cat((v1, v2), -1); concat folded into split matmul ----
    hd = jnp.maximum(jnp.dot(v1, wd1a, preferred_element_type=f32)
                     + jnp.dot(v2, wd1b, preferred_element_type=f32) + bd1, 0.0)
    logits = jnp.dot(hd, wd2, preferred_element_type=f32) + bd2     # (NB, 128); pads = -1e30

    # LogSoftmax over the padded logit rows; -1e30 padded lanes contribute exp()=0
    mm = jnp.max(logits, axis=1, keepdims=True)
    lse = jnp.log(jnp.sum(jnp.exp(logits - mm), axis=1, keepdims=True)) + mm
    out_ref[0] = logits - lse


def decomp_forward_batched(sentences1, sentences2, params, nb=None):
    """Batched forward. sentences1: (B, L1) int32, sentences2: (B, L2) int32 -> (B, O)."""
    emb = params["embed"]
    B, L1 = sentences1.shape
    L2 = sentences2.shape[1]
    Ltot = L1 + L2
    E = emb.shape[1]
    H = params["wt2"].shape[1]
    O = params["wd2"].shape[1]
    OP = 128                                                  # lane-dense padded output width

    assert E % 8 == 0 and H % 8 == 0, "packed-slab views assume sublane-aligned E, H"

    # Examples per grid step: target ~256 stacked rows for MXU fill, but keep the grid
    # length >= 2 whenever B >= 2 so v7x's two TensorCores both get work.
    if nb is None:
        nb = max(1, min(max(1, 256 // Ltot), pl.cdiv(B, 2)))
    G = pl.cdiv(B, nb)
    Bp = G * nb
    N = nb * Ltot

    # ---- single embedding gather on concatenated (batch-padded) token ids ----
    tokens = jnp.concatenate([sentences1, sentences2], axis=1)           # (B, Ltot)
    if Bp != B:
        tokens = jnp.concatenate(
            [tokens, jnp.zeros((Bp - B, Ltot), tokens.dtype)], axis=0)   # pad examples
    s = emb[tokens].astype(jnp.float32).reshape(Bp * Ltot, E)            # (Bp*Ltot, E)

    # ---- constant mask / selectors built once on the host ----
    idx = np.arange(N)
    ex = idx // Ltot
    is_s1 = (idx % Ltot) < L1
    valid = (ex[:, None] == ex[None, :]) & (is_s1[:, None] != is_s1[None, :])
    mask = jnp.asarray(np.where(valid, 0.0, -1e30).astype(np.float32))   # (N, N)
    same_ex = ex[None, :] == np.arange(nb)[:, None]
    sel1 = jnp.asarray((same_ex & is_s1[None, :]).astype(np.float32))    # (nb, N)
    sel2 = jnp.asarray((same_ex & ~is_s1[None, :]).astype(np.float32))   # (nb, N)

    # ---- pack weights/biases into 3 slabs; fold L*bp2@wd1 into bd1 ----
    wp1, wd1 = params["wp1"], params["wd1"]
    w_slab = jnp.concatenate(
        [params["wt1"], params["wt2"], wp1[:E], wp1[E:], params["wp2"],
         wd1[:H], wd1[H:]], axis=0).astype(jnp.float32)                  # (3E+4H, H)
    bd1_adj = (params["bd1"]
               + L1 * (params["bp2"] @ wd1[:H])
               + L2 * (params["bp2"] @ wd1[H:]))
    b_slab = jnp.concatenate(
        [params["bt1"], params["bt2"], params["bp1"], bd1_adj],
        axis=0).astype(jnp.float32)                                      # (4, H)
    wd2_pad = jnp.zeros((H, OP), jnp.float32).at[:, :O].set(params["wd2"])
    bd2_pad = jnp.full((1, OP), -1e30, jnp.float32).at[:, :O].set(params["bd2"])
    d_slab = jnp.concatenate([wd2_pad, bd2_pad], axis=0)                 # (H+1, OP)

    kernel = functools.partial(decomp_kernel, E=E, H=H)
    out = pl.pallas_call(
        kernel,
        out_shape=jax.ShapeDtypeStruct((G, nb, OP), jnp.float32),
        grid=(G,),
        in_specs=[
            pl.BlockSpec((N, E), lambda g: (g, 0)),            # NB examples' rows per step
            pl.BlockSpec(mask.shape, lambda g: (0, 0)),        # constants: resident in VMEM
            pl.BlockSpec(sel1.shape, lambda g: (0, 0)),
            pl.BlockSpec(sel2.shape, lambda g: (0, 0)),
            pl.BlockSpec(w_slab.shape, lambda g: (0, 0)),
            pl.BlockSpec(b_slab.shape, lambda g: (0, 0)),
            pl.BlockSpec(d_slab.shape, lambda g: (0, 0)),
        ],
        out_specs=pl.BlockSpec((1, nb, OP), lambda g: (g, 0, 0)),
        compiler_params=pltpu.CompilerParams(dimension_semantics=("parallel",)),
    )(s, mask, sel1, sel2, w_slab, b_slab, d_slab)
    return out.reshape(Bp, OP)[:B, :O]                                   # (B, O)


def decomp_forward(sentence1, sentence2, params):
    """Single-pair forward matching the original module's interface."""
    return decomp_forward_batched(sentence1[None], sentence2[None], params)[0]


def decomp_reference(sentence1, sentence2, params):
    """Pure-JAX reference mirroring the PyTorch module."""
    emb = params["embed"]
    s1, s2 = emb[sentence1], emb[sentence2]

    def transform(x):
        h = jnp.maximum(x @ params["wt1"] + params["bt1"][0], 0.0)
        return h @ params["wt2"] + params["bt2"][0]

    t1, t2 = transform(s1), transform(s2)
    sim1 = t1 @ t2.T
    sim2 = t2 @ t1.T

    def align(sims, e):
        return jax.nn.softmax(sims, axis=1) @ e

    c1 = jnp.concatenate([s1, align(sim1, s2)], axis=1)
    c2 = jnp.concatenate([s2, align(sim2, s1)], axis=1)

    def pair(x):
        h = jnp.maximum(x @ params["wp1"] + params["bp1"][0], 0.0)
        return h @ params["wp2"] + params["bp2"][0]

    v1 = jnp.sum(pair(c1), axis=0)
    v2 = jnp.sum(pair(c2), axis=0)
    v = jnp.concatenate([v1, v2], axis=0)
    h = jnp.maximum(v @ params["wd1"] + params["bd1"][0], 0.0)
    logits = h @ params["wd2"] + params["bd2"][0]
    return jax.nn.log_softmax(logits, axis=0)


def init_params(key, vocab, emb, hidden, output):
    ks = jax.random.split(key, 16)

    def u(k, shape, fan_in):
        bound = 1.0 / np.sqrt(fan_in)
        return jax.random.uniform(k, shape, jnp.float32, -bound, bound)

    return {
        "embed": jax.random.normal(ks[0], (vocab, emb), jnp.float32),
        # linear_transform (weights stored [in, out])
        "wt1": u(ks[1], (emb, hidden), emb), "bt1": u(ks[2], (1, hidden), emb),
        "wt2": u(ks[3], (hidden, hidden), hidden), "bt2": u(ks[4], (1, hidden), hidden),
        # linear_pair
        "wp1": u(ks[5], (2 * emb, hidden), 2 * emb), "bp1": u(ks[6], (1, hidden), 2 * emb),
        "wp2": u(ks[7], (hidden, hidden), hidden), "bp2": u(ks[8], (1, hidden), hidden),
        # linear_decide
        "wd1": u(ks[9], (2 * hidden, hidden), 2 * hidden), "bd1": u(ks[10], (1, hidden), 2 * hidden),
        "wd2": u(ks[11], (hidden, output), hidden), "bd2": u(ks[12], (1, output), hidden),
    }


if __name__ == "__main__":
    VOCAB, EMB, HIDDEN, OUTPUT = 50, 32, 32, 4
    L1, L2, B = 8, 8, 4

    key = jax.random.PRNGKey(0)
    kp, k1, k2 = jax.random.split(key, 3)
    params = init_params(kp, VOCAB, EMB, HIDDEN, OUTPUT)
    s1_batch = jax.random.randint(k1, (B, L1), 0, VOCAB, dtype=jnp.int32)
    s2_batch = jax.random.randint(k2, (B, L2), 0, VOCAB, dtype=jnp.int32)

    # batched kernel call: NB=2 examples per step, grid=(2,) parallel -> v7x TC sharding
    pred_batch = jax.block_until_ready(decomp_forward_batched(s1_batch, s2_batch, params))

    # odd batch exercises the B % NB != 0 padding path
    pred_odd = jax.block_until_ready(
        decomp_forward_batched(s1_batch[:3], s2_batch[:3], params))

    # single-pair path matching the original module's interface
    pred_single = jax.block_until_ready(decomp_forward(s1_batch[0], s2_batch[0], params))

    for b in range(B):
        ref_b = decomp_reference(s1_batch[b], s2_batch[b], params)
        np.testing.assert_allclose(np.asarray(pred_batch[b]), np.asarray(ref_b),
                                   rtol=1e-4, atol=1e-4)
    np.testing.assert_allclose(np.asarray(pred_odd), np.asarray(pred_batch[:3]),
                               rtol=1e-5, atol=1e-5)
    np.testing.assert_allclose(np.asarray(pred_single), np.asarray(pred_batch[0]),
                               rtol=1e-5, atol=1e-5)
    assert pred_single.shape == (OUTPUT,)
    assert pred_batch.shape == (B, OUTPUT)
    print("KERNEL_OK")
</pallas_src>

<mosaic_0001>
module attributes {stable_mosaic.version = 11 : i64} {
  func.func @decomp_kernel(%arg0: i32, %arg1: memref<32x32xf32, #tpu.memory_space<vmem>>, %arg2: memref<32x32xf32, #tpu.memory_space<vmem>>, %arg3: memref<2x32xf32, #tpu.memory_space<vmem>>, %arg4: memref<2x32xf32, #tpu.memory_space<vmem>>, %arg5: memref<224x32xf32, #tpu.memory_space<vmem>>, %arg6: memref<4x32xf32, #tpu.memory_space<vmem>>, %arg7: memref<33x128xf32, #tpu.memory_space<vmem>>, %arg8: memref<1x2x128xf32, #tpu.memory_space<vmem>>) attributes {dimension_semantics = [#tpu.dimension_semantics<parallel>], iteration_bounds = array<i64: 2>, scalar_prefetch = 0 : i64, scratch_operands = 0 : i64, tpu.core_type = #tpu.core_type<tc>, window_params = [{transform_indices = @transform_0, window_bounds = array<i64: 32, 32>}, {pipeline_mode = #tpu.pipeline_mode<synchronous>, transform_indices = @transform_1, window_bounds = array<i64: 32, 32>}, {pipeline_mode = #tpu.pipeline_mode<synchronous>, transform_indices = @transform_2, window_bounds = array<i64: 2, 32>}, {pipeline_mode = #tpu.pipeline_mode<synchronous>, transform_indices = @transform_3, window_bounds = array<i64: 2, 32>}, {pipeline_mode = #tpu.pipeline_mode<synchronous>, transform_indices = @transform_4, window_bounds = array<i64: 224, 32>}, {pipeline_mode = #tpu.pipeline_mode<synchronous>, transform_indices = @transform_5, window_bounds = array<i64: 4, 32>}, {pipeline_mode = #tpu.pipeline_mode<synchronous>, transform_indices = @transform_6, window_bounds = array<i64: 33, 128>}, {transform_indices = @transform_7, window_bounds = array<i64: 1, 2, 128>}]} {
    %c0 = arith.constant 0 : index
    %c0_0 = arith.constant 0 : index
    %0 = vector.load %arg1[%c0, %c0_0] : memref<32x32xf32, #tpu.memory_space<vmem>>, vector<32x32xf32>
    %c0_1 = arith.constant 0 : index
    %c0_2 = arith.constant 0 : index
    %1 = vector.load %arg2[%c0_1, %c0_2] : memref<32x32xf32, #tpu.memory_space<vmem>>, vector<32x32xf32>
    %c0_3 = arith.constant 0 : index
    %c0_4 = arith.constant 0 : index
    %2 = vector.load %arg3[%c0_3, %c0_4] : memref<2x32xf32, #tpu.memory_space<vmem>>, vector<2x32xf32>
    %c0_5 = arith.constant 0 : index
    %c0_6 = arith.constant 0 : index
    %3 = vector.load %arg4[%c0_5, %c0_6] : memref<2x32xf32, #tpu.memory_space<vmem>>, vector<2x32xf32>
    %c0_7 = arith.constant 0 : index
    %c0_8 = arith.constant 0 : index
    %4 = vector.load %arg5[%c0_7, %c0_8] : memref<224x32xf32, #tpu.memory_space<vmem>>, vector<32x32xf32>
    %c32 = arith.constant 32 : index
    %c0_9 = arith.constant 0 : index
    %5 = vector.load %arg5[%c32, %c0_9] : memref<224x32xf32, #tpu.memory_space<vmem>>, vector<32x32xf32>
    %c64 = arith.constant 64 : index
    %c0_10 = arith.constant 0 : index
    %6 = vector.load %arg5[%c64, %c0_10] : memref<224x32xf32, #tpu.memory_space<vmem>>, vector<32x32xf32>
    %c96 = arith.constant 96 : index
    %c0_11 = arith.constant 0 : index
    %7 = vector.load %arg5[%c96, %c0_11] : memref<224x32xf32, #tpu.memory_space<vmem>>, vector<32x32xf32>
    %c128 = arith.constant 128 : index
    %c0_12 = arith.constant 0 : index
    %8 = vector.load %arg5[%c128, %c0_12] : memref<224x32xf32, #tpu.memory_space<vmem>>, vector<32x32xf32>
    %c160 = arith.constant 160 : index
    %c0_13 = arith.constant 0 : index
    %9 = vector.load %arg5[%c160, %c0_13] : memref<224x32xf32, #tpu.memory_space<vmem>>, vector<32x32xf32>
    %c192 = arith.constant 192 : index
    %c0_14 = arith.constant 0 : index
    %10 = vector.load %arg5[%c192, %c0_14] : memref<224x32xf32, #tpu.memory_space<vmem>>, vector<32x32xf32>
    %c0_15 = arith.constant 0 : index
    %c0_16 = arith.constant 0 : index
    %11 = vector.load %arg6[%c0_15, %c0_16] : memref<4x32xf32, #tpu.memory_space<vmem>>, vector<1x32xf32>
    %c1 = arith.constant 1 : index
    %c0_17 = arith.constant 0 : index
    %12 = vector.load %arg6[%c1, %c0_17] : memref<4x32xf32, #tpu.memory_space<vmem>>, vector<1x32xf32>
    %c2 = arith.constant 2 : index
    %c0_18 = arith.constant 0 : index
    %13 = vector.load %arg6[%c2, %c0_18] : memref<4x32xf32, #tpu.memory_space<vmem>>, vector<1x32xf32>
    %c3 = arith.constant 3 : index
    %c0_19 = arith.constant 0 : index
    %14 = vector.load %arg6[%c3, %c0_19] : memref<4x32xf32, #tpu.memory_space<vmem>>, vector<1x32xf32>
    %c0_20 = arith.constant 0 : index
    %c0_21 = arith.constant 0 : index
    %15 = vector.load %arg7[%c0_20, %c0_21] : memref<33x128xf32, #tpu.memory_space<vmem>>, vector<32x128xf32>
    %c32_22 = arith.constant 32 : index
    %c0_23 = arith.constant 0 : index
    %16 = vector.load %arg7[%c32_22, %c0_23] : memref<33x128xf32, #tpu.memory_space<vmem>>, vector<1x128xf32>
    %cst = arith.constant dense<0.000000e+00> : vector<32x32xf32>
    %17 = tpu.matmul %0, %4, %cst {dimension_numbers = #tpu.dot_dimension_numbers<[1], [0], [0], [1], [0, 0, 1, 1], [], []>} : vector<32x32xf32>, vector<32x32xf32>, vector<32x32xf32> -> vector<32x32xf32>
    %18 = vector.broadcast %11 : vector<1x32xf32> to vector<32x32xf32>
    %19 = arith.addf %17, %18 : vector<32x32xf32>
    %cst_24 = arith.constant 0.000000e+00 : f32
    %20 = vector.broadcast %cst_24 : f32 to vector<32x32xf32>
    %21 = arith.maximumf %19, %20 : vector<32x32xf32>
    %cst_25 = arith.constant dense<0.000000e+00> : vector<32x32xf32>
    %22 = tpu.matmul %21, %5, %cst_25 {dimension_numbers = #tpu.dot_dimension_numbers<[1], [0], [0], [1], [0, 0, 1, 1], [], []>} : vector<32x32xf32>, vector<32x32xf32>, vector<32x32xf32> -> vector<32x32xf32>
    %23 = vector.broadcast %12 : vector<1x32xf32> to vector<32x32xf32>
    %24 = arith.addf %22, %23 : vector<32x32xf32>
    %cst_26 = arith.constant dense<0.000000e+00> : vector<32x32xf32>
    %25 = tpu.matmul %24, %24, %cst_26 {dimension_numbers = #tpu.dot_dimension_numbers<[1], [1], [0], [0], [0, 0, 1, 0], [], []>} : vector<32x32xf32>, vector<32x32xf32>, vector<32x32xf32> -> vector<32x32xf32>
    %26 = arith.addf %25, %1 : vector<32x32xf32>
    %cst_27 = arith.constant dense<0xFF800000> : vector<32xf32>
    %27 = vector.multi_reduction <maximumf>, %26, %cst_27 [1] : vector<32x32xf32> to vector<32xf32>
    %28 = vector.shape_cast %27 : vector<32xf32> to vector<32x1xf32>
    %29 = vector.broadcast %28 : vector<32x1xf32> to vector<32x32xf32>
    %30 = arith.subf %26, %29 : vector<32x32xf32>
    %31 = math.exp %30 : vector<32x32xf32>
    %cst_28 = arith.constant dense<0.000000e+00> : vector<32xf32>
    %32 = vector.multi_reduction <add>, %31, %cst_28 [1] : vector<32x32xf32> to vector<32xf32>
    %33 = vector.shape_cast %32 : vector<32xf32> to vector<32x1xf32>
    %cst_29 = arith.constant 1.000000e+00 : f32
    %34 = vector.broadcast %cst_29 : f32 to vector<32x1xf32>
    %35 = arith.divf %34, %33 : vector<32x1xf32>
    %cst_30 = arith.constant dense<0.000000e+00> : vector<32x32xf32>
    %36 = tpu.matmul %31, %0, %cst_30 {dimension_numbers = #tpu.dot_dimension_numbers<[1], [0], [0], [1], [0, 0, 1, 1], [], []>} : vector<32x32xf32>, vector<32x32xf32>, vector<32x32xf32> -> vector<32x32xf32>
    %37 = vector.broadcast %35 : vector<32x1xf32> to vector<32x32xf32>
    %38 = arith.mulf %36, %37 : vector<32x32xf32>
    %cst_31 = arith.constant dense<0.000000e+00> : vector<32x32xf32>
    %39 = tpu.matmul %0, %6, %cst_31 {dimension_numbers = #tpu.dot_dimension_numbers<[1], [0], [0], [1], [0, 0, 1, 1], [], []>} : vector<32x32xf32>, vector<32x32xf32>, vector<32x32xf32> -> vector<32x32xf32>
    %cst_32 = arith.constant dense<0.000000e+00> : vector<32x32xf32>
    %40 = tpu.matmul %38, %7, %cst_32 {dimension_numbers = #tpu.dot_dimension_numbers<[1], [0], [0], [1], [0, 0, 1, 1], [], []>} : vector<32x32xf32>, vector<32x32xf32>, vector<32x32xf32> -> vector<32x32xf32>
    %41 = arith.addf %39, %40 : vector<32x32xf32>
    %42 = vector.broadcast %13 : vector<1x32xf32> to vector<32x32xf32>
    %43 = arith.addf %41, %42 : vector<32x32xf32>
    %cst_33 = arith.constant 0.000000e+00 : f32
    %44 = vector.broadcast %cst_33 : f32 to vector<32x32xf32>
    %45 = arith.maximumf %43, %44 : vector<32x32xf32>
    %cst_34 = arith.constant dense<0.000000e+00> : vector<2x32xf32>
    %46 = tpu.matmul %2, %45, %cst_34 {dimension_numbers = #tpu.dot_dimension_numbers<[1], [0], [0], [1], [0, 0, 1, 1], [], []>} : vector<2x32xf32>, vector<32x32xf32>, vector<2x32xf32> -> vector<2x32xf32>
    %cst_35 = arith.constant dense<0.000000e+00> : vector<2x32xf32>
    %47 = tpu.matmul %46, %8, %cst_35 {dimension_numbers = #tpu.dot_dimension_numbers<[1], [0], [0], [1], [0, 0, 1, 1], [], []>} : vector<2x32xf32>, vector<32x32xf32>, vector<2x32xf32> -> vector<2x32xf32>
    %cst_36 = arith.constant dense<0.000000e+00> : vector<2x32xf32>
    %48 = tpu.matmul %3, %45, %cst_36 {dimension_numbers = #tpu.dot_dimension_numbers<[1], [0], [0], [1], [0, 0, 1, 1], [], []>} : vector<2x32xf32>, vector<32x32xf32>, vector<2x32xf32> -> vector<2x32xf32>
    %cst_37 = arith.constant dense<0.000000e+00> : vector<2x32xf32>
    %49 = tpu.matmul %48, %8, %cst_37 {dimension_numbers = #tpu.dot_dimension_numbers<[1], [0], [0], [1], [0, 0, 1, 1], [], []>} : vector<2x32xf32>, vector<32x32xf32>, vector<2x32xf32> -> vector<2x32xf32>
    %cst_38 = arith.constant dense<0.000000e+00> : vector<2x32xf32>
    %50 = tpu.matmul %47, %9, %cst_38 {dimension_numbers = #tpu.dot_dimension_numbers<[1], [0], [0], [1], [0, 0, 1, 1], [], []>} : vector<2x32xf32>, vector<32x32xf32>, vector<2x32xf32> -> vector<2x32xf32>
    %cst_39 = arith.constant dense<0.000000e+00> : vector<2x32xf32>
    %51 = tpu.matmul %49, %10, %cst_39 {dimension_numbers = #tpu.dot_dimension_numbers<[1], [0], [0], [1], [0, 0, 1, 1], [], []>} : vector<2x32xf32>, vector<32x32xf32>, vector<2x32xf32> -> vector<2x32xf32>
    %52 = arith.addf %50, %51 : vector<2x32xf32>
    %53 = vector.broadcast %14 : vector<1x32xf32> to vector<2x32xf32>
    %54 = arith.addf %52, %53 : vector<2x32xf32>
    %cst_40 = arith.constant 0.000000e+00 : f32
    %55 = vector.broadcast %cst_40 : f32 to vector<2x32xf32>
    %56 = arith.maximumf %54, %55 : vector<2x32xf32>
    %cst_41 = arith.constant dense<0.000000e+00> : vector<2x128xf32>
    %57 = tpu.matmul %56, %15, %cst_41 {dimension_numbers = #tpu.dot_dimension_numbers<[1], [0], [0], [1], [0, 0, 1, 1], [], []>} : vector<2x32xf32>, vector<32x128xf32>, vector<2x128xf32> -> vector<2x128xf32>
    %58 = vector.broadcast %16 : vector<1x128xf32> to vector<2x128xf32>
    %59 = arith.addf %57, %58 : vector<2x128xf32>
    %cst_42 = arith.constant dense<0xFF800000> : vector<2xf32>
    %60 = vector.multi_reduction <maximumf>, %59, %cst_42 [1] : vector<2x128xf32> to vector<2xf32>
    %61 = vector.shape_cast %60 : vector<2xf32> to vector<2x1xf32>
    %62 = vector.broadcast %61 : vector<2x1xf32> to vector<2x128xf32>
    %63 = arith.subf %59, %62 : vector<2x128xf32>
    %64 = math.exp %63 : vector<2x128xf32>
    %cst_43 = arith.constant dense<0.000000e+00> : vector<2xf32>
    %65 = vector.multi_reduction <add>, %64, %cst_43 [1] : vector<2x128xf32> to vector<2xf32>
    %66 = vector.shape_cast %65 : vector<2xf32> to vector<2x1xf32>
    %67 = math.log %66 : vector<2x1xf32>
    %68 = arith.addf %67, %61 : vector<2x1xf32>
    %69 = vector.broadcast %68 : vector<2x1xf32> to vector<2x128xf32>
    %70 = arith.subf %59, %69 : vector<2x128xf32>
    %c0_44 = arith.constant 0 : index
    %c0_45 = arith.constant 0 : index
    %c0_46 = arith.constant 0 : index
    %71 = vector.load %arg8[%c0_44, %c0_45, %c0_46] : memref<1x2x128xf32, #tpu.memory_space<vmem>>, vector<1x2x128xf32>
    %72 = vector.shape_cast %71 : vector<1x2x128xf32> to vector<2x128xf32>
    %73 = vector.shape_cast %70 : vector<2x128xf32> to vector<1x2x128xf32>
    tpu.vector_store %arg8[%c0_44, %c0_45, %c0_46], %73 {strides = array<i32>} : memref<1x2x128xf32, #tpu.memory_space<vmem>>, vector<1x2x128xf32>,
    return
  }
  func.func @transform_0(%arg0: i32) -> (i32, i32) {
    %c0_i32 = arith.constant 0 : i32
    %c0_i32_0 = arith.constant 0 : i32
    return %arg0, %c0_i32 : i32, i32
  }
  func.func @transform_1(%arg0: i32) -> (i32, i32) {
    %c0_i32 = arith.constant 0 : i32
    %c0_i32_0 = arith.constant 0 : i32
    %c0_i32_1 = arith.constant 0 : i32
    return %c0_i32, %c0_i32_0 : i32, i32
  }
  func.func @transform_2(%arg0: i32) -> (i32, i32) {
    %c0_i32 = arith.constant 0 : i32
    %c0_i32_0 = arith.constant 0 : i32
    %c0_i32_1 = arith.constant 0 : i32
    return %c0_i32, %c0_i32_0 : i32, i32
  }
  func.func @transform_3(%arg0: i32) -> (i32, i32) {
    %c0_i32 = arith.constant 0 : i32
    %c0_i32_0 = arith.constant 0 : i32
    %c0_i32_1 = arith.constant 0 : i32
    return %c0_i32, %c0_i32_0 : i32, i32
  }
  func.func @transform_4(%arg0: i32) -> (i32, i32) {
    %c0_i32 = arith.constant 0 : i32
    %c0_i32_0 = arith.constant 0 : i32
    %c0_i32_1 = arith.constant 0 : i32
    return %c0_i32, %c0_i32_0 : i32, i32
  }
  func.func @transform_5(%arg0: i32) -> (i32, i32) {
    %c0_i32 = arith.constant 0 : i32
    %c0_i32_0 = arith.constant 0 : i32
    %c0_i32_1 = arith.constant 0 : i32
    return %c0_i32, %c0_i32_0 : i32, i32
  }
  func.func @transform_6(%arg0: i32) -> (i32, i32) {
    %c0_i32 = arith.constant 0 : i32
    %c0_i32_0 = arith.constant 0 : i32
    %c0_i32_1 = arith.constant 0 : i32
    return %c0_i32, %c0_i32_0 : i32, i32
  }
  func.func @transform_7(%arg0: i32) -> (i32, i32, i32) {
    %c0_i32 = arith.constant 0 : i32
    %c0_i32_0 = arith.constant 0 : i32
    %c0_i32_1 = arith.constant 0 : i32
    return %arg0, %c0_i32, %c0_i32_0 : i32, i32, i32
  }
}

</mosaic_0001>

<llo_original>
// kernel: tpu_custom_call.1
$region0: #{tpu_custom_call.1}
  #allocation0 [shape = 'u32[]', space=smem, size = 0x4, offset = 0x4, fixed_abs, tag = 'smem constant byte address 0x4 - core index']
  #allocation1 [shape = 'u32[144,128]{1,0:T(1,128)}', space=vmem, size = 0x12000, scoped, tag = 'internal scratch']
  %s0 = inlined_call_operand.vmem [shape: f32[64,32], index: 0, kind: input, shape index: {}]
  %s1 = inlined_call_operand.vmem [shape: f32[32,32], index: 1, kind: input, shape index: {}]
  %s2 = inlined_call_operand.vmem [shape: f32[2,32], index: 2, kind: input, shape index: {}]
  %s3 = inlined_call_operand.vmem [shape: f32[2,32], index: 3, kind: input, shape index: {}]
  %s4 = inlined_call_operand.vmem [shape: f32[224,32], index: 4, kind: input, shape index: {}]
  %s5 = inlined_call_operand.vmem [shape: f32[4,32], index: 5, kind: input, shape index: {}]
  %s6 = inlined_call_operand.vmem [shape: f32[33,128], index: 6, kind: input, shape index: {}]
  %s7 = inlined_call_operand.hbm [shape: f32[2,2,128], index: 7, kind: output, shape index: {}]
  %s8 = sld [smem:[#allocation0]]
  $region61: #{tpu_custom_call.1} parent=0
    _
  %s10 = ssub.s32 1, %s8
  %s11 = scalar_select 0, %s10, %s8
  $region1: #{tpu_custom_call.1} parent=0
    #allocation2 [shape = 'u8[2048]{0}', space=vmem, size = 0x800, scoped, tag = 'output window, operand 0']
    #allocation3 [shape = 's32[2]{0}', space=sflag, size = 0x8, scoped, tag = 'scoped memory for tpu_custom_call.1']
    %12 = vsyncpa [#allocation3], 0
    %s13 = scalar_lea.sflag [#allocation3], 1
    %14 = vsyncpa %s13, 0
    loop: start=0, step=1, limit=4
    $region2: #{tpu_custom_call.1} parent=1 // loop_pre_header
      _
    $region3: #{tpu_custom_call.1} parent=1 // loop_header
      %s16 = sphi 0, %s20
      %p17 = scmp.ge.s32.totalorder %s16, 4
      %s26 = sphi 0, %s28
      %s29 = sphi 0, %s26
      %s30 = sphi 0, %s29
      %s46 = sphi 0, %s30
      %s50 = sphi 0, %s50
      %s52 = sphi 0, %s50
      %s53 = sphi 0, %s52
      %s67 = sphi 0, %s53
      %s71 = sphi 0, %s71
      %s73 = sphi 0, %s71
      %s74 = sphi 0, %s73
      %s88 = sphi 0, %s74
      %s92 = sphi 0, %s92
      %s94 = sphi 0, %s92
      %s95 = sphi 0, %s94
      %s109 = sphi 0, %s95
      %s113 = sphi 0, %s113
      %s115 = sphi 0, %s113
      %s116 = sphi 0, %s115
      %s130 = sphi 0, %s116
      %s134 = sphi 0, %s134
      %s136 = sphi 0, %s134
      %s137 = sphi 0, %s136
      %s151 = sphi 0, %s137
      %s155 = sphi 0, %s155
      %s157 = sphi 0, %s155
      %s158 = sphi 0, %s157
      %s172 = sphi 0, %s158
      %s178 = sphi 0, %s180
      %s181 = sphi 0, %s178
      %s182 = sphi 0, %s181
      %s198 = sphi 0, %s182
    $region4: #{tpu_custom_call.1} parent=1 // loop_header_branch
      %19 = sbr.rel (%p17) target = $region8
    $region5: #{tpu_custom_call.1} parent=1 // loop_body
      %s21 = ssub.s32 %s16, 1
      %s22 = ssub.s32 %s16, 2
      %s23 = sadd.s32 %s16, 1
      %s24 = ssub.s32 %s16, %s23
      %p25 = scmp.eq.s32.totalorder %s24, 0
      %s27 = sadd.s32 %s26, 1
      %s28 = scalar_select %p25, %s26, %s27
      %p31 = pneg %p25
      %p32 = scmp.eq.s32.totalorder %s16, 1
      %p33 = por %p31, %p32
      %p34 = scmp.ne.s32.totalorder %s26, %s29
      %p35 = scmp.eq.s32.totalorder %s16, 0
      %p36 = por %p34, %p35
      %p37 = scmp.ne.s32.totalorder %s26, %s29
      %p38 = scmp.eq.s32.totalorder %s21, 1
      %p39 = por %p37, %p38
      %p40 = scmp.ne.s32.totalorder %s29, %s30
      %p41 = scmp.eq.s32.totalorder %s21, 0
      %p42 = por %p40, %p41
      %p43 = scmp.ne.s32.totalorder %s29, %s30
      %p44 = scmp.eq.s32.totalorder %s22, 1
      %p45 = por %p43, %p44
      %p47 = scmp.ne.s32.totalorder %s30, %s46
      %p48 = scmp.eq.s32.totalorder %s22, 0
      %p49 = por %p47, %p48
      %s51 = sadd.s32 %s50, 1
      %p54 = scmp.eq.s32.totalorder %s16, 1
      %p55 = scmp.ne.s32.totalorder %s50, %s52
      %p56 = scmp.eq.s32.totalorder %s16, 0
      %p57 = por %p55, %p56
      %p58 = scmp.ne.s32.totalorder %s50, %s52
      %p59 = scmp.eq.s32.totalorder %s21, 1
      %p60 = por %p58, %p59
      %p61 = scmp.ne.s32.totalorder %s52, %s53
      %p62 = scmp.eq.s32.totalorder %s21, 0
      %p63 = por %p61, %p62
      %p64 = scmp.ne.s32.totalorder %s52, %s53
      %p65 = scmp.eq.s32.totalorder %s22, 1
      %p66 = por %p64, %p65
      %p68 = scmp.ne.s32.totalorder %s53, %s67
      %p69 = scmp.eq.s32.totalorder %s22, 0
      %p70 = por %p68, %p69
      %s72 = sadd.s32 %s71, 1
      %p75 = scmp.eq.s32.totalorder %s16, 1
      %p76 = scmp.ne.s32.totalorder %s71, %s73
      %p77 = scmp.eq.s32.totalorder %s16, 0
      %p78 = por %p76, %p77
      %p79 = scmp.ne.s32.totalorder %s71, %s73
      %p80 = scmp.eq.s32.totalorder %s21, 1
      %p81 = por %p79, %p80
      %p82 = scmp.ne.s32.totalorder %s73, %s74
      %p83 = scmp.eq.s32.totalorder %s21, 0
      %p84 = por %p82, %p83
      %p85 = scmp.ne.s32.totalorder %s73, %s74
      %p86 = scmp.eq.s32.totalorder %s22, 1
      %p87 = por %p85, %p86
      %p89 = scmp.ne.s32.totalorder %s74, %s88
      %p90 = scmp.eq.s32.totalorder %s22, 0
      %p91 = por %p89, %p90
      %s93 = sadd.s32 %s92, 1
      %p96 = scmp.eq.s32.totalorder %s16, 1
      %p97 = scmp.ne.s32.totalorder %s92, %s94
      %p98 = scmp.eq.s32.totalorder %s16, 0
      %p99 = por %p97, %p98
      %p100 = scmp.ne.s32.totalorder %s92, %s94
      %p101 = scmp.eq.s32.totalorder %s21, 1
      %p102 = por %p100, %p101
      %p103 = scmp.ne.s32.totalorder %s94, %s95
      %p104 = scmp.eq.s32.totalorder %s21, 0
      %p105 = por %p103, %p104
      %p106 = scmp.ne.s32.totalorder %s94, %s95
      %p107 = scmp.eq.s32.totalorder %s22, 1
      %p108 = por %p106, %p107
      %p110 = scmp.ne.s32.totalorder %s95, %s109
      %p111 = scmp.eq.s32.totalorder %s22, 0
      %p112 = por %p110, %p111
      %s114 = sadd.s32 %s113, 1
      %p117 = scmp.eq.s32.totalorder %s16, 1
      %p118 = scmp.ne.s32.totalorder %s113, %s115
      %p119 = scmp.eq.s32.totalorder %s16, 0
      %p120 = por %p118, %p119
      %p121 = scmp.ne.s32.totalorder %s113, %s115
      %p122 = scmp.eq.s32.totalorder %s21, 1
      %p123 = por %p121, %p122
      %p124 = scmp.ne.s32.totalorder %s115, %s116
      %p125 = scmp.eq.s32.totalorder %s21, 0
      %p126 = por %p124, %p125
      %p127 = scmp.ne.s32.totalorder %s115, %s116
      %p128 = scmp.eq.s32.totalorder %s22, 1
      %p129 = por %p127, %p128
      %p131 = scmp.ne.s32.totalorder %s116, %s130
      %p132 = scmp.eq.s32.totalorder %s22, 0
      %p133 = por %p131, %p132
      %s135 = sadd.s32 %s134, 1
      %p138 = scmp.eq.s32.totalorder %s16, 1
      %p139 = scmp.ne.s32.totalorder %s134, %s136
      %p140 = scmp.eq.s32.totalorder %s16, 0
      %p141 = por %p139, %p140
      %p142 = scmp.ne.s32.totalorder %s134, %s136
      %p143 = scmp.eq.s32.totalorder %s21, 1
      %p144 = por %p142, %p143
      %p145 = scmp.ne.s32.totalorder %s136, %s137
      %p146 = scmp.eq.s32.totalorder %s21, 0
      %p147 = por %p145, %p146
      %p148 = scmp.ne.s32.totalorder %s136, %s137
      %p149 = scmp.eq.s32.totalorder %s22, 1
      %p150 = por %p148, %p149
      %p152 = scmp.ne.s32.totalorder %s137, %s151
      %p153 = scmp.eq.s32.totalorder %s22, 0
      %p154 = por %p152, %p153
      %s156 = sadd.s32 %s155, 1
      %p159 = scmp.eq.s32.totalorder %s16, 1
      %p160 = scmp.ne.s32.totalorder %s155, %s157
      %p161 = scmp.eq.s32.totalorder %s16, 0
      %p162 = por %p160, %p161
      %p163 = scmp.ne.s32.totalorder %s155, %s157
      %p164 = scmp.eq.s32.totalorder %s21, 1
      %p165 = por %p163, %p164
      %p166 = scmp.ne.s32.totalorder %s157, %s158
      %p167 = scmp.eq.s32.totalorder %s21, 0
      %p168 = por %p166, %p167
      %p169 = scmp.ne.s32.totalorder %s157, %s158
      %p170 = scmp.eq.s32.totalorder %s22, 1
      %p171 = por %p169, %p170
      %p173 = scmp.ne.s32.totalorder %s158, %s172
      %p174 = scmp.eq.s32.totalorder %s22, 0
      %p175 = por %p173, %p174
      %s176 = ssub.s32 %s16, %s23
      %p177 = scmp.eq.s32.totalorder %s176, 0
      %s179 = sadd.s32 %s178, 1
      %s180 = scalar_select %p177, %s178, %s179
      %p183 = pneg %p177
      %p184 = scmp.eq.s32.totalorder %s16, 1
      %p185 = por %p183, %p184
      %p186 = scmp.ne.s32.totalorder %s178, %s181
      %p187 = scmp.eq.s32.totalorder %s16, 0
      %p188 = por %p186, %p187
      %p189 = scmp.ne.s32.totalorder %s178, %s181
      %p190 = scmp.eq.s32.totalorder %s21, 1
      %p191 = por %p189, %p190
      %p192 = scmp.ne.s32.totalorder %s181, %s182
      %p193 = scmp.eq.s32.totalorder %s21, 0
      %p194 = por %p192, %p193
      %p195 = scmp.ne.s32.totalorder %s181, %s182
      %p196 = scmp.eq.s32.totalorder %s22, 1
      %p197 = por %p195, %p196
      %p199 = scmp.ne.s32.totalorder %s182, %s198
      %p200 = scmp.eq.s32.totalorder %s22, 0
      %p201 = por %p199, %p200
      %p202 = scmp.le.s32.totalorder 1, %s16
      %p203 = scmp.lt.s32.totalorder %s16, 3
      %p204 = pnand %p202, %p203
      %p205 = pneg %p204
      // Predicated region
      $region9: #{tpu_custom_call.1} parent=5 // pred_check
        _
      $region10: #{tpu_custom_call.1} parent=5 // pred_check_branch
        %207 = sbr.rel (%p204) target = $region12
      $region11: #{tpu_custom_call.1} parent=5 // pred_region
        %s208 = ssub.s32 %s16, 1
        // Predicated region
        $region13: #{tpu_custom_call.1} parent=11 // pred_check
          %p209 = pneg %p63
        $region14: #{tpu_custom_call.1} parent=11 // pred_check_branch
          %211 = sbr.rel (%p209) target = $region16
        $region15: #{tpu_custom_call.1} parent=11 // pred_region
          _
        $region16: #{tpu_custom_call.1} parent=11 // pred_fallthru
          _
        // Predicated region
        $region17: #{tpu_custom_call.1} parent=11 // pred_check
          %p212 = pneg %p84
        $region18: #{tpu_custom_call.1} parent=11 // pred_check_branch
          %214 = sbr.rel (%p212) target = $region20
        $region19: #{tpu_custom_call.1} parent=11 // pred_region
          _
        $region20: #{tpu_custom_call.1} parent=11 // pred_fallthru
          _
        // Predicated region
        $region21: #{tpu_custom_call.1} parent=11 // pred_check
          %p215 = pneg %p105
        $region22: #{tpu_custom_call.1} parent=11 // pred_check_branch
          %217 = sbr.rel (%p215) target = $region24
        $region23: #{tpu_custom_call.1} parent=11 // pred_region
          _
        $region24: #{tpu_custom_call.1} parent=11 // pred_fallthru
          _
        // Predicated region
        $region25: #{tpu_custom_call.1} parent=11 // pred_check
          %p218 = pneg %p126
        $region26: #{tpu_custom_call.1} parent=11 // pred_check_branch
          %220 = sbr.rel (%p218) target = $region28
        $region27: #{tpu_custom_call.1} parent=11 // pred_region
          _
        $region28: #{tpu_custom_call.1} parent=11 // pred_fallthru
          _
        // Predicated region
        $region29: #{tpu_custom_call.1} parent=11 // pred_check
          %p221 = pneg %p147
        $region30: #{tpu_custom_call.1} parent=11 // pred_check_branch
          %223 = sbr.rel (%p221) target = $region32
        $region31: #{tpu_custom_call.1} parent=11 // pred_region
          _
        $region32: #{tpu_custom_call.1} parent=11 // pred_fallthru
          _
        // Predicated region
        $region33: #{tpu_custom_call.1} parent=11 // pred_check
          %p224 = pneg %p168
        $region34: #{tpu_custom_call.1} parent=11 // pred_check_branch
          %226 = sbr.rel (%p224) target = $region36
        $region35: #{tpu_custom_call.1} parent=11 // pred_region
          _
        $region36: #{tpu_custom_call.1} parent=11 // pred_fallthru
          _
      $region12: #{tpu_custom_call.1} parent=5 // pred_fallthru
        _
      %p227 = scmp.lt.s32.totalorder %s16, 2
      // Predicated region
      $region37: #{tpu_custom_call.1} parent=5 // pred_check
        %p228 = pneg %p227
      $region38: #{tpu_custom_call.1} parent=5 // pred_check_branch
        %230 = sbr.rel (%p228) target = $region40
      $region39: #{tpu_custom_call.1} parent=5 // pred_region
        // Predicated region
        $region41: #{tpu_custom_call.1} parent=39 // pred_check
          %p231 = pneg %p36
        $region42: #{tpu_custom_call.1} parent=39 // pred_check_branch
          %233 = sbr.rel (%p231) target = $region44
        $region43: #{tpu_custom_call.1} parent=39 // pred_region
          %s234 = smul.u32 4, %s16
          %p235 = scmp.lt.s32.totalorder %s234, 7
          %s236 = scalar_select %p235, %s234, 7
          %s237 = smul.addr %s236, 8
          %s238 = scalar_lea.vmem %s0, %s237
          %s239 = smul.u32 4, %s16
        $region44: #{tpu_custom_call.1} parent=39 // pred_fallthru
          _
      $region40: #{tpu_custom_call.1} parent=5 // pred_fallthru
        _
      %p240 = scmp.le.s32.totalorder 1, %s16
      %p241 = scmp.lt.s32.totalorder %s16, 3
      %p242 = pnand %p240, %p241
      %p243 = pneg %p242
      // Predicated region
      $region45: #{tpu_custom_call.1} parent=5 // pred_check
        _
      $region46: #{tpu_custom_call.1} parent=5 // pred_check_branch
        %245 = sbr.rel (%p242) target = $region48
      $region47: #{tpu_custom_call.1} parent=5 // pred_region
        %s246 = ssub.s32 %s16, 1
        %s247 = smul.u32 4, %s21
        %p248 = scmp.lt.s32.totalorder %s247, 7
        %s249 = scalar_select %p248, %s247, 7
        %s250 = smul.addr %s249, 8
        %s251 = scalar_lea.vmem %s0, %s250
        %p252 = pneg %p42
        %p253 = pneg %p39
        %p254 = pneg %p63
        %p255 = pneg %p60
        %p256 = pneg %p84
        %p257 = pneg %p81
        %p258 = pneg %p105
        %p259 = pneg %p102
        %p260 = pneg %p126
        %p261 = pneg %p123
        %p262 = pneg %p147
        %p263 = pneg %p144
        %p264 = pneg %p168
        %p265 = pneg %p165
        %p266 = pneg %p194
        %p267 = pneg %p191
        %s268 = sand.u32 %s181, 1
        %s269 = scalar_lea.sflag [#allocation3], %s268
        %s270 = sand.u32 %s181, 1
        %s271 = smul.addr %s270, 2
        %s272 = scalar_lea.vmem [#allocation2], %s271
        %s273 = smul.u32 4, %s21
        %p274 = scmp.lt.s32.totalorder %s273, 7
        %s275 = scalar_select %p274, %s273, 7
        %s276 = smul.addr %s275, 8
        %s277 = scalar_lea.vmem %s0, %s276
        %s278 = smul.u32 4, %s21
        %v279 = vld [vmem:[%s277] sm:$0xff]
        %v280 = vld [vmem:[%s277 + $0x8] sm:$0xff]
        %v281 = vld [vmem:[%s277 + $0x10] sm:$0xff]
        %v282 = vld [vmem:[%s277 + $0x18] sm:$0xff]
        %v283 = vld [vmem:[%s1] sm:$0xff]
        %v284 = vld [vmem:[%s1 + $0x8] sm:$0xff]
        %v285 = vld [vmem:[%s1 + $0x10] sm:$0xff]
        %v286 = vld [vmem:[%s1 + $0x18] sm:$0xff]
        %v287 = vld [vmem:[%s2] sm:$0x3]
        %v288 = vld [vmem:[%s3] sm:$0x3]
        %v289 = vld [vmem:[%s4] sm:$0xff]
        %v290 = vld [vmem:[%s4 + $0x8] sm:$0xff]
        %v291 = vld [vmem:[%s4 + $0x10] sm:$0xff]
        %v292 = vld [vmem:[%s4 + $0x18] sm:$0xff]
        %v293 = vld [vmem:[%s4 + $0x20] sm:$0xff]
        %v294 = vld [vmem:[%s4 + $0x28] sm:$0xff]
        %v295 = vld [vmem:[%s4 + $0x30] sm:$0xff]
        %v296 = vld [vmem:[%s4 + $0x38] sm:$0xff]
        %v297 = vld [vmem:[%s4 + $0x40] sm:$0xff]
        %v298 = vld [vmem:[%s4 + $0x48] sm:$0xff]
        %v299 = vld [vmem:[%s4 + $0x50] sm:$0xff]
        %v300 = vld [vmem:[%s4 + $0x58] sm:$0xff]
        %v301 = vld [vmem:[%s4 + $0x60] sm:$0xff]
        %v302 = vld [vmem:[%s4 + $0x68] sm:$0xff]
        %v303 = vld [vmem:[%s4 + $0x70] sm:$0xff]
        %v304 = vld [vmem:[%s4 + $0x78] sm:$0xff]
        %v305 = vld [vmem:[%s4 + $0x80] sm:$0xff]
        %v306 = vld [vmem:[%s4 + $0x88] sm:$0xff]
        %v307 = vld [vmem:[%s4 + $0x90] sm:$0xff]
        %v308 = vld [vmem:[%s4 + $0x98] sm:$0xff]
        %v309 = vld [vmem:[%s4 + $0xa0] sm:$0xff]
        %v310 = vld [vmem:[%s4 + $0xa8] sm:$0xff]
        %v311 = vld [vmem:[%s4 + $0xb0] sm:$0xff]
        %v312 = vld [vmem:[%s4 + $0xb8] sm:$0xff]
        %v313 = vld [vmem:[%s4 + $0xc0] sm:$0xff]
        %v314 = vld [vmem:[%s4 + $0xc8] sm:$0xff]
        %v315 = vld [vmem:[%s4 + $0xd0] sm:$0xff]
        %v316 = vld [vmem:[%s4 + $0xd8] sm:$0xff]
        %v317 = vld [vmem:[%s5] sm:$0x1]
        %v318 = vld [vmem:[%s5 + $0x1] sm:$0x1]
        %v319 = vld [vmem:[%s5 + $0x2] sm:$0x1]
        %v320 = vld [vmem:[%s5 + $0x3] sm:$0x1]
        %v321 = vld [vmem:[%s6] sm:$0xff]
        %v322 = vld [vmem:[%s6 + $0x8] sm:$0xff]
        %v323 = vld [vmem:[%s6 + $0x10] sm:$0xff]
        %v324 = vld [vmem:[%s6 + $0x18] sm:$0xff]
        %v325 = vld [vmem:[%s6 + $0x20] sm:$0x1]
        %v326 = vlaneseq
        %v327 = vshrl.u32 %v326, 7
        %v328 = vsub.s32 0, %v327
        %v329 = vrot.slane %v317, %v328
        %vm330 = vcmask 261120
        %v332 = vsel %vm330, %v279, 0
        %v335 = vsel %vm330, %v280, 0
        %v338 = vsel %vm330, %v281, 0
        %v341 = vsel %vm330, %v282, 0
        %343 = vmatprep.subr.mxu0 0.0
        %344 = vmatpush1.msra.mxu0 0.0
        %345 = vmatprep.subr.mxu0 0.0
        %346 = vmatpush1.msra.mxu0 0.0
        %347 = vmatprep.subr.mxu0 0.0
        %348 = vmatpush1.msra.mxu0 0.0
        %349 = vmatprep.subr.mxu0 0.0
        %350 = vmatpush1.msra.mxu0 0.0
        %351 = vmatprep.subr.mxu0 0.0
        %352 = vmatpush1.msra.mxu0 0.0
        %353 = vmatprep.subr.mxu0 0.0
        %354 = vmatpush1.msra.mxu0 0.0
        %355 = vmatprep.subr.mxu0 0.0
        %356 = vmatpush1.msra.mxu0 0.0
        %357 = vmatprep.subr.mxu0 0.0
        %358 = vmatpush1.msra.mxu0 0.0
        %359 = vmatprep.subr.mxu0 0.0
        %360 = vmatpush1.msra.mxu0 0.0
        %361 = vmatprep.subr.mxu0 0.0
        %362 = vmatpush1.msra.mxu0 0.0
        %363 = vmatprep.subr.mxu0 0.0
        %364 = vmatpush1.msra.mxu0 0.0
        %365 = vmatprep.subr.mxu0 0.0
        %366 = vmatpush1.msra.mxu0 0.0
        %367 = vmatprep.subr.mxu0 0.0
        %368 = vmatpush1.msra.mxu0 %v292
        %369 = vmatprep.subr.mxu0 0.0
        %370 = vmatpush1.msra.mxu0 %v291
        %371 = vmatprep.subr.mxu0 0.0
        %372 = vmatpush1.msra.mxu0 %v290
        %373 = vmatprep.subr.mxu0 0.0
        %374 = vmatpush1.msra.mxu0 %v289
        %375 = vmatprep.subr.mxu0 0.0
        %376 = vmatpush2.msra.mxu0 0.0
        %377 = vmatprep.subr.mxu0 0.0
        %378 = vmatpush2.msra.mxu0 0.0
        %379 = vmatprep.subr.mxu0 0.0
        %380 = vmatpush2.msra.mxu0 0.0
        %381 = vmatprep.subr.mxu0 0.0
        %382 = vmatpush2.msra.mxu0 0.0
        %383 = vmatprep.subr.mxu0 0.0
        %384 = vmatpush2.msra.mxu0 0.0
        %385 = vmatprep.subr.mxu0 0.0
        %386 = vmatpush2.msra.mxu0 0.0
        %387 = vmatprep.subr.mxu0 0.0
        %388 = vmatpush2.msra.mxu0 0.0
        %389 = vmatprep.subr.mxu0 0.0
        %390 = vmatpush2.msra.mxu0 0.0
        %391 = vmatprep.subr.mxu0 0.0
        %392 = vmatpush2.msra.mxu0 0.0
        %393 = vmatprep.subr.mxu0 0.0
        %394 = vmatpush2.msra.mxu0 0.0
        %395 = vmatprep.subr.mxu0 0.0
        %396 = vmatpush2.msra.mxu0 0.0
        %397 = vmatprep.subr.mxu0 0.0
        %398 = vmatpush2.msra.mxu0 0.0
        %399 = vmatprep.subr.mxu0 0.0
        %400 = vmatpush2.msra.mxu0 0.0
        %401 = vmatprep.subr.mxu0 0.0
        %402 = vmatpush2.msra.mxu0 0.0
        %403 = vmatprep.subr.mxu0 0.0
        %404 = vmatpush2.msra.mxu0 0.0
        %405 = vmatprep.subr.mxu0 0.0
        %406 = vmatpush2.msra.mxu0 0.0
        %407 = vmatprep.mubr.f32.mxu0 0.0
        %408 = vmatmul.mubr.f32.gmra.mxu0 %v332
        %v409 = vpop.f32.mrf.mxu0
        %v410 = vadd.f32 %v329, %v409
        %v411 = vpop.f32.mrf.mxu0
        %412 = vmatprep.mubr.f32.mxu0 0.0
        %413 = vmatmul.mubr.f32.gmra.mxu0 %v335
        %v414 = vpop.f32.mrf.mxu0
        %v415 = vadd.f32 %v329, %v414
        %v416 = vpop.f32.mrf.mxu0
        %417 = vmatprep.mubr.f32.mxu0 0.0
        %418 = vmatmul.mubr.f32.gmra.mxu0 %v338
        %v419 = vpop.f32.mrf.mxu0
        %v420 = vadd.f32 %v329, %v419
        %v421 = vpop.f32.mrf.mxu0
        %422 = vmatprep.mubr.f32.mxu0 0.0
        %423 = vmatmul.mubr.f32.gmra.mxu0 %v341
        %v424 = vpop.f32.mrf.mxu0
        %v425 = vadd.f32 %v329, %v424
        %v426 = vpop.f32.mrf.mxu0
        %427 = vdwg.mxu0
        %v428 = vmax.f32 %v410, 0.0
        %v429 = vmax.f32 %v415, 0.0
        %v430 = vmax.f32 %v420, 0.0
        %v431 = vmax.f32 %v425, 0.0
        %v432 = vlaneseq
        %v433 = vshrl.u32 %v432, 7
        %v434 = vsub.s32 0, %v433
        %v435 = vrot.slane %v318, %v434
        %v437 = vsel %vm330, %v428, 0
        %v440 = vsel %vm330, %v429, 0
        %v443 = vsel %vm330, %v430, 0
        %v446 = vsel %vm330, %v431, 0
        %448 = vmatprep.subr.mxu0 0.0
        %449 = vmatpush1.msra.mxu0 0.0
        %450 = vmatprep.subr.mxu0 0.0
        %451 = vmatpush1.msra.mxu0 0.0
        %452 = vmatprep.subr.mxu0 0.0
        %453 = vmatpush1.msra.mxu0 0.0
        %454 = vmatprep.subr.mxu0 0.0
        %455 = vmatpush1.msra.mxu0 0.0
        %456 = vmatprep.subr.mxu0 0.0
        %457 = vmatpush1.msra.mxu0 0.0
        %458 = vmatprep.subr.mxu0 0.0
        %459 = vmatpush1.msra.mxu0 0.0
        %460 = vmatprep.subr.mxu0 0.0
        %461 = vmatpush1.msra.mxu0 0.0
        %462 = vmatprep.subr.mxu0 0.0
        %463 = vmatpush1.msra.mxu0 0.0
        %464 = vmatprep.subr.mxu0 0.0
        %465 = vmatpush1.msra.mxu0 0.0
        %466 = vmatprep.subr.mxu0 0.0
        %467 = vmatpush1.msra.mxu0 0.0
        %468 = vmatprep.subr.mxu0 0.0
        %469 = vmatpush1.msra.mxu0 0.0
        %470 = vmatprep.subr.mxu0 0.0
        %471 = vmatpush1.msra.mxu0 0.0
        %472 = vmatprep.subr.mxu0 0.0
        %473 = vmatpush1.msra.mxu0 %v296
        %474 = vmatprep.subr.mxu0 0.0
        %475 = vmatpush1.msra.mxu0 %v295
        %476 = vmatprep.subr.mxu0 0.0
        %477 = vmatpush1.msra.mxu0 %v294
        %478 = vmatprep.subr.mxu0 0.0
        %479 = vmatpush1.msra.mxu0 %v293
        %480 = vmatprep.subr.mxu0 0.0
        %481 = vmatpush2.msra.mxu0 0.0
        %482 = vmatprep.subr.mxu0 0.0
        %483 = vmatpush2.msra.mxu0 0.0
        %484 = vmatprep.subr.mxu0 0.0
        %485 = vmatpush2.msra.mxu0 0.0
        %486 = vmatprep.subr.mxu0 0.0
        %487 = vmatpush2.msra.mxu0 0.0
        %488 = vmatprep.subr.mxu0 0.0
        %489 = vmatpush2.msra.mxu0 0.0
        %490 = vmatprep.subr.mxu0 0.0
        %491 = vmatpush2.msra.mxu0 0.0
        %492 = vmatprep.subr.mxu0 0.0
        %493 = vmatpush2.msra.mxu0 0.0
        %494 = vmatprep.subr.mxu0 0.0
        %495 = vmatpush2.msra.mxu0 0.0
        %496 = vmatprep.subr.mxu0 0.0
        %497 = vmatpush2.msra.mxu0 0.0
        %498 = vmatprep.subr.mxu0 0.0
        %499 = vmatpush2.msra.mxu0 0.0
        %500 = vmatprep.subr.mxu0 0.0
        %501 = vmatpush2.msra.mxu0 0.0
        %502 = vmatprep.subr.mxu0 0.0
        %503 = vmatpush2.msra.mxu0 0.0
        %504 = vmatprep.subr.mxu0 0.0
        %505 = vmatpush2.msra.mxu0 0.0
        %506 = vmatprep.subr.mxu0 0.0
        %507 = vmatpush2.msra.mxu0 0.0
        %508 = vmatprep.subr.mxu0 0.0
        %509 = vmatpush2.msra.mxu0 0.0
        %510 = vmatprep.subr.mxu0 0.0
        %511 = vmatpush2.msra.mxu0 0.0
        %512 = vmatprep.mubr.f32.mxu0 0.0
        %513 = vmatmul.mubr.f32.gmra.mxu0 %v437
        %v514 = vpop.f32.mrf.mxu0
        %v515 = vadd.f32 %v435, %v514
        %v516 = vpop.f32.mrf.mxu0
        %517 = vmatprep.mubr.f32.mxu0 0.0
        %518 = vmatmul.mubr.f32.gmra.mxu0 %v440
        %v519 = vpop.f32.mrf.mxu0
        %v520 = vadd.f32 %v435, %v519
        %v521 = vpop.f32.mrf.mxu0
        %522 = vmatprep.mubr.f32.mxu0 0.0
        %523 = vmatmul.mubr.f32.gmra.mxu0 %v443
        %v524 = vpop.f32.mrf.mxu0
        %v525 = vadd.f32 %v435, %v524
        %v526 = vpop.f32.mrf.mxu0
        %527 = vmatprep.mubr.f32.mxu0 0.0
        %528 = vmatmul.mubr.f32.gmra.mxu0 %v446
        %v529 = vpop.f32.mrf.mxu0
        %v530 = vadd.f32 %v435, %v529
        %v531 = vpop.f32.mrf.mxu0
        %532 = vdwg.mxu0
        %v534 = vsel %vm330, %v515, 0
        %v537 = vsel %vm330, %v520, 0
        %v540 = vsel %vm330, %v525, 0
        %v543 = vsel %vm330, %v530, 0
        %545 = vmatprep.subr.mxu0 0.0
        %546 = vmatpush1.xpose.msra.mxu0 0.0
        %547 = vmatprep.subr.mxu0 0.0
        %548 = vmatpush1.xpose.msra.mxu0 0.0
        %549 = vmatprep.subr.mxu0 0.0
        %550 = vmatpush1.xpose.msra.mxu0 0.0
        %551 = vmatprep.subr.mxu0 0.0
        %552 = vmatpush1.xpose.msra.mxu0 0.0
        %553 = vmatprep.subr.mxu0 0.0
        %554 = vmatpush1.xpose.msra.mxu0 0.0
        %555 = vmatprep.subr.mxu0 0.0
        %556 = vmatpush1.xpose.msra.mxu0 0.0
        %557 = vmatprep.subr.mxu0 0.0
        %558 = vmatpush1.xpose.msra.mxu0 0.0
        %559 = vmatprep.subr.mxu0 0.0
        %560 = vmatpush1.xpose.msra.mxu0 0.0
        %561 = vmatprep.subr.mxu0 0.0
        %562 = vmatpush1.xpose.msra.mxu0 0.0
        %563 = vmatprep.subr.mxu0 0.0
        %564 = vmatpush1.xpose.msra.mxu0 0.0
        %565 = vmatprep.subr.mxu0 0.0
        %566 = vmatpush1.xpose.msra.mxu0 0.0
        %567 = vmatprep.subr.mxu0 0.0
        %568 = vmatpush1.xpose.msra.mxu0 0.0
        %569 = vmatprep.subr.mxu0 0.0
        %570 = vmatpush1.xpose.msra.mxu0 %v543
        %571 = vmatprep.subr.mxu0 0.0
        %572 = vmatpush1.xpose.msra.mxu0 %v540
        %573 = vmatprep.subr.mxu0 0.0
        %574 = vmatpush1.xpose.msra.mxu0 %v537
        %575 = vmatprep.subr.mxu0 0.0
        %576 = vmatpush1.xpose.msra.mxu0 %v534
        %577 = vmatprep.subr.mxu0 0.0
        %578 = vmatpush2.xpose.msra.mxu0 0.0
        %579 = vmatprep.subr.mxu0 0.0
        %580 = vmatpush2.xpose.msra.mxu0 0.0
        %581 = vmatprep.subr.mxu0 0.0
        %582 = vmatpush2.xpose.msra.mxu0 0.0
        %583 = vmatprep.subr.mxu0 0.0
        %584 = vmatpush2.xpose.msra.mxu0 0.0
        %585 = vmatprep.subr.mxu0 0.0
        %586 = vmatpush2.xpose.msra.mxu0 0.0
        %587 = vmatprep.subr.mxu0 0.0
        %588 = vmatpush2.xpose.msra.mxu0 0.0
        %589 = vmatprep.subr.mxu0 0.0
        %590 = vmatpush2.xpose.msra.mxu0 0.0
        %591 = vmatprep.subr.mxu0 0.0
        %592 = vmatpush2.xpose.msra.mxu0 0.0
        %593 = vmatprep.subr.mxu0 0.0
        %594 = vmatpush2.xpose.msra.mxu0 0.0
        %595 = vmatprep.subr.mxu0 0.0
        %596 = vmatpush2.xpose.msra.mxu0 0.0
        %597 = vmatprep.subr.mxu0 0.0
        %598 = vmatpush2.xpose.msra.mxu0 0.0
        %599 = vmatprep.subr.mxu0 0.0
        %600 = vmatpush2.xpose.msra.mxu0 0.0
        %601 = vmatprep.subr.mxu0 0.0
        %602 = vmatpush2.xpose.msra.mxu0 0.0
        %603 = vmatprep.subr.mxu0 0.0
        %604 = vmatpush2.xpose.msra.mxu0 0.0
        %605 = vmatprep.subr.mxu0 0.0
        %606 = vmatpush2.xpose.msra.mxu0 0.0
        %607 = vmatprep.subr.mxu0 0.0
        %608 = vmatpush2.xpose.msra.mxu0 0.0
        %609 = vmatprep.mubr.f32.mxu0 0.0
        %610 = vmatmul.mubr.f32.gmra.mxu0 %v534
        %v611 = vpop.f32.mrf.mxu0
        %v612 = vadd.f32 %v283, %v611
        %v613 = vpop.f32.mrf.mxu0
        %614 = vmatprep.mubr.f32.mxu0 0.0
        %615 = vmatmul.mubr.f32.gmra.mxu0 %v537
        %v616 = vpop.f32.mrf.mxu0
        %v617 = vadd.f32 %v284, %v616
        %v618 = vpop.f32.mrf.mxu0
        %619 = vmatprep.mubr.f32.mxu0 0.0
        %620 = vmatmul.mubr.f32.gmra.mxu0 %v540
        %v621 = vpop.f32.mrf.mxu0
        %v622 = vadd.f32 %v285, %v621
        %v623 = vpop.f32.mrf.mxu0
        %624 = vmatprep.mubr.f32.mxu0 0.0
        %625 = vmatmul.mubr.f32.gmra.mxu0 %v543
        %v626 = vpop.f32.mrf.mxu0
        %v627 = vadd.f32 %v286, %v626
        %v628 = vpop.f32.mrf.mxu0
        %629 = vdwg.mxu0
        %v630 = vsel %vm330, %v612, -inf
        %631 = vmax.xlane.f32.xlu0 %v630
        %v632 = vpop.xlane.xlu0 %631
        %v633 = vsel %vm330, %v617, -inf
        %634 = vmax.xlane.f32.xlu0 %v633
        %v635 = vpop.xlane.xlu0 %634
        %v636 = vsel %vm330, %v622, -inf
        %637 = vmax.xlane.f32.xlu0 %v636
        %v638 = vpop.xlane.xlu0 %637
        %v639 = vsel %vm330, %v627, -inf
        %640 = vmax.xlane.f32.xlu0 %v639
        %v641 = vpop.xlane.xlu0 %640
        %v642 = vsub.f32 %v612, %v632
        %v643 = vsub.f32 %v617, %v635
        %v644 = vsub.f32 %v622, %v638
        %v645 = vsub.f32 %v627, %v641
        %v646 = vmul.f32 %v642, 1.442695
        %v647 = vpow.pop %v646
        %v648 = vmul.f32 %v643, 1.442695
        %v649 = vpow.pop %v648
        %v650 = vmul.f32 %v644, 1.442695
        %v651 = vpow.pop %v650
        %v652 = vmul.f32 %v645, 1.442695
        %v653 = vpow.pop %v652
        %v654 = vsel %vm330, %v647, 0.0
        %655 = vadd.xlane.f32.xlu0 %v654
        %v656 = vpop.xlane.xlu0 %655
        %v657 = vsel %vm330, %v649, 0.0
        %658 = vadd.xlane.f32.xlu0 %v657
        %v659 = vpop.xlane.xlu0 %658
        %v660 = vsel %vm330, %v651, 0.0
        %661 = vadd.xlane.f32.xlu0 %v660
        %v662 = vpop.xlane.xlu0 %661
        %v663 = vsel %vm330, %v653, 0.0
        %664 = vadd.xlane.f32.xlu0 %v663
        %v665 = vpop.xlane.xlu0 %664
        %v666 = vrcp.pop %v656
        %v667 = vmul.f32 1.0, %v666
        %v668 = vrcp.pop %v659
        %v669 = vmul.f32 1.0, %v668
        %v670 = vrcp.pop %v662
        %v671 = vmul.f32 1.0, %v670
        %v672 = vrcp.pop %v665
        %v673 = vmul.f32 1.0, %v672
        %v675 = vsel %vm330, %v647, 0
        %v678 = vsel %vm330, %v649, 0
        %v681 = vsel %vm330, %v651, 0
        %v684 = vsel %vm330, %v653, 0
        %686 = vmatprep.subr.mxu0 0.0
        %687 = vmatpush1.msra.mxu0 0.0
        %688 = vmatprep.subr.mxu0 0.0
        %689 = vmatpush1.msra.mxu0 0.0
        %690 = vmatprep.subr.mxu0 0.0
        %691 = vmatpush1.msra.mxu0 0.0
        %692 = vmatprep.subr.mxu0 0.0
        %693 = vmatpush1.msra.mxu0 0.0
        %694 = vmatprep.subr.mxu0 0.0
        %695 = vmatpush1.msra.mxu0 0.0
        %696 = vmatprep.subr.mxu0 0.0
        %697 = vmatpush1.msra.mxu0 0.0
        %698 = vmatprep.subr.mxu0 0.0
        %699 = vmatpush1.msra.mxu0 0.0
        %700 = vmatprep.subr.mxu0 0.0
        %701 = vmatpush1.msra.mxu0 0.0
        %702 = vmatprep.subr.mxu0 0.0
        %703 = vmatpush1.msra.mxu0 0.0
        %704 = vmatprep.subr.mxu0 0.0
        %705 = vmatpush1.msra.mxu0 0.0
        %706 = vmatprep.subr.mxu0 0.0
        %707 = vmatpush1.msra.mxu0 0.0
        %708 = vmatprep.subr.mxu0 0.0
        %709 = vmatpush1.msra.mxu0 0.0
        %710 = vmatprep.subr.mxu0 0.0
        %711 = vmatpush1.msra.mxu0 %v282
        %712 = vmatprep.subr.mxu0 0.0
        %713 = vmatpush1.msra.mxu0 %v281
        %714 = vmatprep.subr.mxu0 0.0
        %715 = vmatpush1.msra.mxu0 %v280
        %716 = vmatprep.subr.mxu0 0.0
        %717 = vmatpush1.msra.mxu0 %v279
        %718 = vmatprep.subr.mxu0 0.0
        %719 = vmatpush2.msra.mxu0 0.0
        %720 = vmatprep.subr.mxu0 0.0
        %721 = vmatpush2.msra.mxu0 0.0
        %722 = vmatprep.subr.mxu0 0.0
        %723 = vmatpush2.msra.mxu0 0.0
        %724 = vmatprep.subr.mxu0 0.0
        %725 = vmatpush2.msra.mxu0 0.0
        %726 = vmatprep.subr.mxu0 0.0
        %727 = vmatpush2.msra.mxu0 0.0
        %728 = vmatprep.subr.mxu0 0.0
        %729 = vmatpush2.msra.mxu0 0.0
        %730 = vmatprep.subr.mxu0 0.0
        %731 = vmatpush2.msra.mxu0 0.0
        %732 = vmatprep.subr.mxu0 0.0
        %733 = vmatpush2.msra.mxu0 0.0
        %734 = vmatprep.subr.mxu0 0.0
        %735 = vmatpush2.msra.mxu0 0.0
        %736 = vmatprep.subr.mxu0 0.0
        %737 = vmatpush2.msra.mxu0 0.0
        %738 = vmatprep.subr.mxu0 0.0
        %739 = vmatpush2.msra.mxu0 0.0
        %740 = vmatprep.subr.mxu0 0.0
        %741 = vmatpush2.msra.mxu0 0.0
        %742 = vmatprep.subr.mxu0 0.0
        %743 = vmatpush2.msra.mxu0 0.0
        %744 = vmatprep.subr.mxu0 0.0
        %745 = vmatpush2.msra.mxu0 0.0
        %746 = vmatprep.subr.mxu0 0.0
        %747 = vmatpush2.msra.mxu0 0.0
        %748 = vmatprep.subr.mxu0 0.0
        %749 = vmatpush2.msra.mxu0 0.0
        %750 = vmatprep.mubr.f32.mxu0 0.0
        %751 = vmatmul.mubr.f32.gmra.mxu0 %v675
        %v752 = vpop.f32.mrf.mxu0
        %v753 = vadd.f32 0.0, %v752
        %v754 = vpop.f32.mrf.mxu0
        %755 = vmatprep.mubr.f32.mxu0 0.0
        %756 = vmatmul.mubr.f32.gmra.mxu0 %v678
        %v757 = vpop.f32.mrf.mxu0
        %v758 = vadd.f32 0.0, %v757
        %v759 = vpop.f32.mrf.mxu0
        %760 = vmatprep.mubr.f32.mxu0 0.0
        %761 = vmatmul.mubr.f32.gmra.mxu0 %v681
        %v762 = vpop.f32.mrf.mxu0
        %v763 = vadd.f32 0.0, %v762
        %v764 = vpop.f32.mrf.mxu0
        %765 = vmatprep.mubr.f32.mxu0 0.0
        %766 = vmatmul.mubr.f32.gmra.mxu0 %v684
        %v767 = vpop.f32.mrf.mxu0
        %v768 = vadd.f32 0.0, %v767
        %v769 = vpop.f32.mrf.mxu0
        %770 = vdwg.mxu0
        %v771 = vmul.f32 %v753, %v667
        %v772 = vmul.f32 %v758, %v669
        %v773 = vmul.f32 %v763, %v671
        %v774 = vmul.f32 %v768, %v673
        %v776 = vsel %vm330, %v771, 0
        %v779 = vsel %vm330, %v772, 0
        %v782 = vsel %vm330, %v773, 0
        %v785 = vsel %vm330, %v774, 0
        %787 = vmatprep.subr.mxu0 0.0
        %788 = vmatpush1.msra.mxu0 0.0
        %789 = vmatprep.subr.mxu0 0.0
        %790 = vmatpush1.msra.mxu0 0.0
        %791 = vmatprep.subr.mxu0 0.0
        %792 = vmatpush1.msra.mxu0 0.0
        %793 = vmatprep.subr.mxu0 0.0
        %794 = vmatpush1.msra.mxu0 0.0
        %795 = vmatprep.subr.mxu0 0.0
        %796 = vmatpush1.msra.mxu0 0.0
        %797 = vmatprep.subr.mxu0 0.0
        %798 = vmatpush1.msra.mxu0 0.0
        %799 = vmatprep.subr.mxu0 0.0
        %800 = vmatpush1.msra.mxu0 0.0
        %801 = vmatprep.subr.mxu0 0.0
        %802 = vmatpush1.msra.mxu0 0.0
        %803 = vmatprep.subr.mxu0 0.0
        %804 = vmatpush1.msra.mxu0 0.0
        %805 = vmatprep.subr.mxu0 0.0
        %806 = vmatpush1.msra.mxu0 0.0
        %807 = vmatprep.subr.mxu0 0.0
        %808 = vmatpush1.msra.mxu0 0.0
        %809 = vmatprep.subr.mxu0 0.0
        %810 = vmatpush1.msra.mxu0 0.0
        %811 = vmatprep.subr.mxu0 0.0
        %812 = vmatpush1.msra.mxu0 %v304
        %813 = vmatprep.subr.mxu0 0.0
        %814 = vmatpush1.msra.mxu0 %v303
        %815 = vmatprep.subr.mxu0 0.0
        %816 = vmatpush1.msra.mxu0 %v302
        %817 = vmatprep.subr.mxu0 0.0
        %818 = vmatpush1.msra.mxu0 %v301
        %819 = vmatprep.subr.mxu0 0.0
        %820 = vmatpush2.msra.mxu0 0.0
        %821 = vmatprep.subr.mxu0 0.0
        %822 = vmatpush2.msra.mxu0 0.0
        %823 = vmatprep.subr.mxu0 0.0
        %824 = vmatpush2.msra.mxu0 0.0
        %825 = vmatprep.subr.mxu0 0.0
        %826 = vmatpush2.msra.mxu0 0.0
        %827 = vmatprep.subr.mxu0 0.0
        %828 = vmatpush2.msra.mxu0 0.0
        %829 = vmatprep.subr.mxu0 0.0
        %830 = vmatpush2.msra.mxu0 0.0
        %831 = vmatprep.subr.mxu0 0.0
        %832 = vmatpush2.msra.mxu0 0.0
        %833 = vmatprep.subr.mxu0 0.0
        %834 = vmatpush2.msra.mxu0 0.0
        %835 = vmatprep.subr.mxu0 0.0
        %836 = vmatpush2.msra.mxu0 0.0
        %837 = vmatprep.subr.mxu0 0.0
        %838 = vmatpush2.msra.mxu0 0.0
        %839 = vmatprep.subr.mxu0 0.0
        %840 = vmatpush2.msra.mxu0 0.0
        %841 = vmatprep.subr.mxu0 0.0
        %842 = vmatpush2.msra.mxu0 0.0
        %843 = vmatprep.subr.mxu0 0.0
        %844 = vmatpush2.msra.mxu0 0.0
        %845 = vmatprep.subr.mxu0 0.0
        %846 = vmatpush2.msra.mxu0 0.0
        %847 = vmatprep.subr.mxu0 0.0
        %848 = vmatpush2.msra.mxu0 0.0
        %849 = vmatprep.subr.mxu0 0.0
        %850 = vmatpush2.msra.mxu0 0.0
        %851 = vmatprep.mubr.f32.mxu0 0.0
        %852 = vmatmul.mubr.f32.gmra.mxu0 %v776
        %v853 = vpop.f32.mrf.mxu0
        %v854 = vadd.f32 0.0, %v853
        %v855 = vpop.f32.mrf.mxu0
        %856 = vmatprep.mubr.f32.mxu0 0.0
        %857 = vmatmul.mubr.f32.gmra.mxu0 %v779
        %v858 = vpop.f32.mrf.mxu0
        %v859 = vadd.f32 0.0, %v858
        %v860 = vpop.f32.mrf.mxu0
        %861 = vmatprep.mubr.f32.mxu0 0.0
        %862 = vmatmul.mubr.f32.gmra.mxu0 %v782
        %v863 = vpop.f32.mrf.mxu0
        %v864 = vadd.f32 0.0, %v863
        %v865 = vpop.f32.mrf.mxu0
        %866 = vmatprep.mubr.f32.mxu0 0.0
        %867 = vmatmul.mubr.f32.gmra.mxu0 %v785
        %v868 = vpop.f32.mrf.mxu0
        %v869 = vadd.f32 0.0, %v868
        %v870 = vpop.f32.mrf.mxu0
        %871 = vdwg.mxu0
        %872 = vmatprep.subr.mxu0 0.0
        %873 = vmatpush1.msra.mxu0 0.0
        %874 = vmatprep.subr.mxu0 0.0
        %875 = vmatpush1.msra.mxu0 0.0
        %876 = vmatprep.subr.mxu0 0.0
        %877 = vmatpush1.msra.mxu0 0.0
        %878 = vmatprep.subr.mxu0 0.0
        %879 = vmatpush1.msra.mxu0 0.0
        %880 = vmatprep.subr.mxu0 0.0
        %881 = vmatpush1.msra.mxu0 0.0
        %882 = vmatprep.subr.mxu0 0.0
        %883 = vmatpush1.msra.mxu0 0.0
        %884 = vmatprep.subr.mxu0 0.0
        %885 = vmatpush1.msra.mxu0 0.0
        %886 = vmatprep.subr.mxu0 0.0
        %887 = vmatpush1.msra.mxu0 0.0
        %888 = vmatprep.subr.mxu0 0.0
        %889 = vmatpush1.msra.mxu0 0.0
        %890 = vmatprep.subr.mxu0 0.0
        %891 = vmatpush1.msra.mxu0 0.0
        %892 = vmatprep.subr.mxu0 0.0
        %893 = vmatpush1.msra.mxu0 0.0
        %894 = vmatprep.subr.mxu0 0.0
        %895 = vmatpush1.msra.mxu0 0.0
        %896 = vmatprep.subr.mxu0 0.0
        %897 = vmatpush1.msra.mxu0 %v300
        %898 = vmatprep.subr.mxu0 0.0
        %899 = vmatpush1.msra.mxu0 %v299
        %900 = vmatprep.subr.mxu0 0.0
        %901 = vmatpush1.msra.mxu0 %v298
        %902 = vmatprep.subr.mxu0 0.0
        %903 = vmatpush1.msra.mxu0 %v297
        %904 = vmatprep.subr.mxu0 0.0
        %905 = vmatpush2.msra.mxu0 0.0
        %906 = vmatprep.subr.mxu0 0.0
        %907 = vmatpush2.msra.mxu0 0.0
        %908 = vmatprep.subr.mxu0 0.0
        %909 = vmatpush2.msra.mxu0 0.0
        %910 = vmatprep.subr.mxu0 0.0
        %911 = vmatpush2.msra.mxu0 0.0
        %912 = vmatprep.subr.mxu0 0.0
        %913 = vmatpush2.msra.mxu0 0.0
        %914 = vmatprep.subr.mxu0 0.0
        %915 = vmatpush2.msra.mxu0 0.0
        %916 = vmatprep.subr.mxu0 0.0
        %917 = vmatpush2.msra.mxu0 0.0
        %918 = vmatprep.subr.mxu0 0.0
        %919 = vmatpush2.msra.mxu0 0.0
        %920 = vmatprep.subr.mxu0 0.0
        %921 = vmatpush2.msra.mxu0 0.0
        %922 = vmatprep.subr.mxu0 0.0
        %923 = vmatpush2.msra.mxu0 0.0
        %924 = vmatprep.subr.mxu0 0.0
        %925 = vmatpush2.msra.mxu0 0.0
        %926 = vmatprep.subr.mxu0 0.0
        %927 = vmatpush2.msra.mxu0 0.0
        %928 = vmatprep.subr.mxu0 0.0
        %929 = vmatpush2.msra.mxu0 0.0
        %930 = vmatprep.subr.mxu0 0.0
        %931 = vmatpush2.msra.mxu0 0.0
        %932 = vmatprep.subr.mxu0 0.0
        %933 = vmatpush2.msra.mxu0 0.0
        %934 = vmatprep.subr.mxu0 0.0
        %935 = vmatpush2.msra.mxu0 0.0
        %936 = vmatprep.mubr.f32.mxu0 0.0
        %937 = vmatmul.mubr.f32.gmra.mxu0 %v332
        %v938 = vpop.f32.mrf.mxu0
        %v939 = vadd.f32 %v854, %v938
        %v940 = vpop.f32.mrf.mxu0
        %941 = vmatprep.mubr.f32.mxu0 0.0
        %942 = vmatmul.mubr.f32.gmra.mxu0 %v335
        %v943 = vpop.f32.mrf.mxu0
        %v944 = vadd.f32 %v859, %v943
        %v945 = vpop.f32.mrf.mxu0
        %946 = vmatprep.mubr.f32.mxu0 0.0
        %947 = vmatmul.mubr.f32.gmra.mxu0 %v338
        %v948 = vpop.f32.mrf.mxu0
        %v949 = vadd.f32 %v864, %v948
        %v950 = vpop.f32.mrf.mxu0
        %951 = vmatprep.mubr.f32.mxu0 0.0
        %952 = vmatmul.mubr.f32.gmra.mxu0 %v341
        %v953 = vpop.f32.mrf.mxu0
        %v954 = vadd.f32 %v869, %v953
        %v955 = vpop.f32.mrf.mxu0
        %956 = vdwg.mxu0
        %v957 = vlaneseq
        %v958 = vshrl.u32 %v957, 7
        %v959 = vsub.s32 0, %v958
        %v960 = vrot.slane %v319, %v959
        %v961 = vadd.f32 %v939, %v960
        %v962 = vadd.f32 %v944, %v960
        %v963 = vadd.f32 %v949, %v960
        %v964 = vadd.f32 %v954, %v960
        %v965 = vmax.f32 %v961, 0.0
        %v966 = vmax.f32 %v962, 0.0
        %v967 = vmax.f32 %v963, 0.0
        %v968 = vmax.f32 %v964, 0.0
        %v970 = vsel %vm330, %v287, 0
        %972 = vmatprep.subr.mxu0 0.0
        %973 = vmatpush1.msra.mxu0 0.0
        %974 = vmatprep.subr.mxu0 0.0
        %975 = vmatpush1.msra.mxu0 0.0
        %976 = vmatprep.subr.mxu0 0.0
        %977 = vmatpush1.msra.mxu0 0.0
        %978 = vmatprep.subr.mxu0 0.0
        %979 = vmatpush1.msra.mxu0 0.0
        %980 = vmatprep.subr.mxu0 0.0
        %981 = vmatpush1.msra.mxu0 0.0
        %982 = vmatprep.subr.mxu0 0.0
        %983 = vmatpush1.msra.mxu0 0.0
        %984 = vmatprep.subr.mxu0 0.0
        %985 = vmatpush1.msra.mxu0 0.0
        %986 = vmatprep.subr.mxu0 0.0
        %987 = vmatpush1.msra.mxu0 0.0
        %988 = vmatprep.subr.mxu0 0.0
        %989 = vmatpush1.msra.mxu0 0.0
        %990 = vmatprep.subr.mxu0 0.0
        %991 = vmatpush1.msra.mxu0 0.0
        %992 = vmatprep.subr.mxu0 0.0
        %993 = vmatpush1.msra.mxu0 0.0
        %994 = vmatprep.subr.mxu0 0.0
        %995 = vmatpush1.msra.mxu0 0.0
        %996 = vmatprep.subr.mxu0 0.0
        %997 = vmatpush1.msra.mxu0 %v968
        %998 = vmatprep.subr.mxu0 0.0
        %999 = vmatpush1.msra.mxu0 %v967
        %1000 = vmatprep.subr.mxu0 0.0
        %1001 = vmatpush1.msra.mxu0 %v966
        %1002 = vmatprep.subr.mxu0 0.0
        %1003 = vmatpush1.msra.mxu0 %v965
        %1004 = vmatprep.subr.mxu0 0.0
        %1005 = vmatpush2.msra.mxu0 0.0
        %1006 = vmatprep.subr.mxu0 0.0
        %1007 = vmatpush2.msra.mxu0 0.0
        %1008 = vmatprep.subr.mxu0 0.0
        %1009 = vmatpush2.msra.mxu0 0.0
        %1010 = vmatprep.subr.mxu0 0.0
        %1011 = vmatpush2.msra.mxu0 0.0
        %1012 = vmatprep.subr.mxu0 0.0
        %1013 = vmatpush2.msra.mxu0 0.0
        %1014 = vmatprep.subr.mxu0 0.0
        %1015 = vmatpush2.msra.mxu0 0.0
        %1016 = vmatprep.subr.mxu0 0.0
        %1017 = vmatpush2.msra.mxu0 0.0
        %1018 = vmatprep.subr.mxu0 0.0
        %1019 = vmatpush2.msra.mxu0 0.0
        %1020 = vmatprep.subr.mxu0 0.0
        %1021 = vmatpush2.msra.mxu0 0.0
        %1022 = vmatprep.subr.mxu0 0.0
        %1023 = vmatpush2.msra.mxu0 0.0
        %1024 = vmatprep.subr.mxu0 0.0
        %1025 = vmatpush2.msra.mxu0 0.0
        %1026 = vmatprep.subr.mxu0 0.0
        %1027 = vmatpush2.msra.mxu0 0.0
        %1028 = vmatprep.subr.mxu0 0.0
        %1029 = vmatpush2.msra.mxu0 0.0
        %1030 = vmatprep.subr.mxu0 0.0
        %1031 = vmatpush2.msra.mxu0 0.0
        %1032 = vmatprep.subr.mxu0 0.0
        %1033 = vmatpush2.msra.mxu0 0.0
        %1034 = vmatprep.subr.mxu0 0.0
        %1035 = vmatpush2.msra.mxu0 0.0
        %1036 = vmatprep.mubr.f32.mxu0 0.0
        %1037 = vmatmul.mubr.f32.gmra.mxu0 %v970
        %v1038 = vpop.f32.mrf.mxu0
        %v1039 = vadd.f32 0.0, %v1038
        %v1040 = vpop.f32.mrf.mxu0
        %1041 = vdwg.mxu0
        %v1043 = vsel %vm330, %v1039, 0
        %1045 = vmatprep.subr.mxu0 0.0
        %1046 = vmatpush1.msra.mxu0 0.0
        %1047 = vmatprep.subr.mxu0 0.0
        %1048 = vmatpush1.msra.mxu0 0.0
        %1049 = vmatprep.subr.mxu0 0.0
        %1050 = vmatpush1.msra.mxu0 0.0
        %1051 = vmatprep.subr.mxu0 0.0
        %1052 = vmatpush1.msra.mxu0 0.0
        %1053 = vmatprep.subr.mxu0 0.0
        %1054 = vmatpush1.msra.mxu0 0.0
        %1055 = vmatprep.subr.mxu0 0.0
        %1056 = vmatpush1.msra.mxu0 0.0
        %1057 = vmatprep.subr.mxu0 0.0
        %1058 = vmatpush1.msra.mxu0 0.0
        %1059 = vmatprep.subr.mxu0 0.0
        %1060 = vmatpush1.msra.mxu0 0.0
        %1061 = vmatprep.subr.mxu0 0.0
        %1062 = vmatpush1.msra.mxu0 0.0
        %1063 = vmatprep.subr.mxu0 0.0
        %1064 = vmatpush1.msra.mxu0 0.0
        %1065 = vmatprep.subr.mxu0 0.0
        %1066 = vmatpush1.msra.mxu0 0.0
        %1067 = vmatprep.subr.mxu0 0.0
        %1068 = vmatpush1.msra.mxu0 0.0
        %1069 = vmatprep.subr.mxu0 0.0
        %1070 = vmatpush1.msra.mxu0 %v308
        %1071 = vmatprep.subr.mxu0 0.0
        %1072 = vmatpush1.msra.mxu0 %v307
        %1073 = vmatprep.subr.mxu0 0.0
        %1074 = vmatpush1.msra.mxu0 %v306
        %1075 = vmatprep.subr.mxu0 0.0
        %1076 = vmatpush1.msra.mxu0 %v305
        %1077 = vmatprep.subr.mxu0 0.0
        %1078 = vmatpush2.msra.mxu0 0.0
        %1079 = vmatprep.subr.mxu0 0.0
        %1080 = vmatpush2.msra.mxu0 0.0
        %1081 = vmatprep.subr.mxu0 0.0
        %1082 = vmatpush2.msra.mxu0 0.0
        %1083 = vmatprep.subr.mxu0 0.0
        %1084 = vmatpush2.msra.mxu0 0.0
        %1085 = vmatprep.subr.mxu0 0.0
        %1086 = vmatpush2.msra.mxu0 0.0
        %1087 = vmatprep.subr.mxu0 0.0
        %1088 = vmatpush2.msra.mxu0 0.0
        %1089 = vmatprep.subr.mxu0 0.0
        %1090 = vmatpush2.msra.mxu0 0.0
        %1091 = vmatprep.subr.mxu0 0.0
        %1092 = vmatpush2.msra.mxu0 0.0
        %1093 = vmatprep.subr.mxu0 0.0
        %1094 = vmatpush2.msra.mxu0 0.0
        %1095 = vmatprep.subr.mxu0 0.0
        %1096 = vmatpush2.msra.mxu0 0.0
        %1097 = vmatprep.subr.mxu0 0.0
        %1098 = vmatpush2.msra.mxu0 0.0
        %1099 = vmatprep.subr.mxu0 0.0
        %1100 = vmatpush2.msra.mxu0 0.0
        %1101 = vmatprep.subr.mxu0 0.0
        %1102 = vmatpush2.msra.mxu0 0.0
        %1103 = vmatprep.subr.mxu0 0.0
        %1104 = vmatpush2.msra.mxu0 0.0
        %1105 = vmatprep.subr.mxu0 0.0
        %1106 = vmatpush2.msra.mxu0 0.0
        %1107 = vmatprep.subr.mxu0 0.0
        %1108 = vmatpush2.msra.mxu0 0.0
        %1109 = vmatprep.mubr.f32.mxu0 0.0
        %1110 = vmatmul.mubr.f32.gmra.mxu0 %v1043
        %v1111 = vpop.f32.mrf.mxu0
        %v1112 = vadd.f32 0.0, %v1111
        %v1113 = vpop.f32.mrf.mxu0
        %1114 = vdwg.mxu0
        %v1116 = vsel %vm330, %v288, 0
        %1118 = vmatprep.subr.mxu0 0.0
        %1119 = vmatpush1.msra.mxu0 0.0
        %1120 = vmatprep.subr.mxu0 0.0
        %1121 = vmatpush1.msra.mxu0 0.0
        %1122 = vmatprep.subr.mxu0 0.0
        %1123 = vmatpush1.msra.mxu0 0.0
        %1124 = vmatprep.subr.mxu0 0.0
        %1125 = vmatpush1.msra.mxu0 0.0
        %1126 = vmatprep.subr.mxu0 0.0
        %1127 = vmatpush1.msra.mxu0 0.0
        %1128 = vmatprep.subr.mxu0 0.0
        %1129 = vmatpush1.msra.mxu0 0.0
        %1130 = vmatprep.subr.mxu0 0.0
        %1131 = vmatpush1.msra.mxu0 0.0
        %1132 = vmatprep.subr.mxu0 0.0
        %1133 = vmatpush1.msra.mxu0 0.0
        %1134 = vmatprep.subr.mxu0 0.0
        %1135 = vmatpush1.msra.mxu0 0.0
        %1136 = vmatprep.subr.mxu0 0.0
        %1137 = vmatpush1.msra.mxu0 0.0
        %1138 = vmatprep.subr.mxu0 0.0
        %1139 = vmatpush1.msra.mxu0 0.0
        %1140 = vmatprep.subr.mxu0 0.0
        %1141 = vmatpush1.msra.mxu0 0.0
        %1142 = vmatprep.subr.mxu0 0.0
        %1143 = vmatpush1.msra.mxu0 %v968
        %1144 = vmatprep.subr.mxu0 0.0
        %1145 = vmatpush1.msra.mxu0 %v967
        %1146 = vmatprep.subr.mxu0 0.0
        %1147 = vmatpush1.msra.mxu0 %v966
        %1148 = vmatprep.subr.mxu0 0.0
        %1149 = vmatpush1.msra.mxu0 %v965
        %1150 = vmatprep.subr.mxu0 0.0
        %1151 = vmatpush2.msra.mxu0 0.0
        %1152 = vmatprep.subr.mxu0 0.0
        %1153 = vmatpush2.msra.mxu0 0.0
        %1154 = vmatprep.subr.mxu0 0.0
        %1155 = vmatpush2.msra.mxu0 0.0
        %1156 = vmatprep.subr.mxu0 0.0
        %1157 = vmatpush2.msra.mxu0 0.0
        %1158 = vmatprep.subr.mxu0 0.0
        %1159 = vmatpush2.msra.mxu0 0.0
        %1160 = vmatprep.subr.mxu0 0.0
        %1161 = vmatpush2.msra.mxu0 0.0
        %1162 = vmatprep.subr.mxu0 0.0
        %1163 = vmatpush2.msra.mxu0 0.0
        %1164 = vmatprep.subr.mxu0 0.0
        %1165 = vmatpush2.msra.mxu0 0.0
        %1166 = vmatprep.subr.mxu0 0.0
        %1167 = vmatpush2.msra.mxu0 0.0
        %1168 = vmatprep.subr.mxu0 0.0
        %1169 = vmatpush2.msra.mxu0 0.0
        %1170 = vmatprep.subr.mxu0 0.0
        %1171 = vmatpush2.msra.mxu0 0.0
        %1172 = vmatprep.subr.mxu0 0.0
        %1173 = vmatpush2.msra.mxu0 0.0
        %1174 = vmatprep.subr.mxu0 0.0
        %1175 = vmatpush2.msra.mxu0 0.0
        %1176 = vmatprep.subr.mxu0 0.0
        %1177 = vmatpush2.msra.mxu0 0.0
        %1178 = vmatprep.subr.mxu0 0.0
        %1179 = vmatpush2.msra.mxu0 0.0
        %1180 = vmatprep.subr.mxu0 0.0
        %1181 = vmatpush2.msra.mxu0 0.0
        %1182 = vmatprep.mubr.f32.mxu0 0.0
        %1183 = vmatmul.mubr.f32.gmra.mxu0 %v1116
        %v1184 = vpop.f32.mrf.mxu0
        %v1185 = vadd.f32 0.0, %v1184
        %v1186 = vpop.f32.mrf.mxu0
        %1187 = vdwg.mxu0
        %v1189 = vsel %vm330, %v1185, 0
        %1191 = vmatprep.subr.mxu0 0.0
        %1192 = vmatpush1.msra.mxu0 0.0
        %1193 = vmatprep.subr.mxu0 0.0
        %1194 = vmatpush1.msra.mxu0 0.0
        %1195 = vmatprep.subr.mxu0 0.0
        %1196 = vmatpush1.msra.mxu0 0.0
        %1197 = vmatprep.subr.mxu0 0.0
        %1198 = vmatpush1.msra.mxu0 0.0
        %1199 = vmatprep.subr.mxu0 0.0
        %1200 = vmatpush1.msra.mxu0 0.0
        %1201 = vmatprep.subr.mxu0 0.0
        %1202 = vmatpush1.msra.mxu0 0.0
        %1203 = vmatprep.subr.mxu0 0.0
        %1204 = vmatpush1.msra.mxu0 0.0
        %1205 = vmatprep.subr.mxu0 0.0
        %1206 = vmatpush1.msra.mxu0 0.0
        %1207 = vmatprep.subr.mxu0 0.0
        %1208 = vmatpush1.msra.mxu0 0.0
        %1209 = vmatprep.subr.mxu0 0.0
        %1210 = vmatpush1.msra.mxu0 0.0
        %1211 = vmatprep.subr.mxu0 0.0
        %1212 = vmatpush1.msra.mxu0 0.0
        %1213 = vmatprep.subr.mxu0 0.0
        %1214 = vmatpush1.msra.mxu0 0.0
        %1215 = vmatprep.subr.mxu0 0.0
        %1216 = vmatpush1.msra.mxu0 %v308
        %1217 = vmatprep.subr.mxu0 0.0
        %1218 = vmatpush1.msra.mxu0 %v307
        %1219 = vmatprep.subr.mxu0 0.0
        %1220 = vmatpush1.msra.mxu0 %v306
        %1221 = vmatprep.subr.mxu0 0.0
        %1222 = vmatpush1.msra.mxu0 %v305
        %1223 = vmatprep.subr.mxu0 0.0
        %1224 = vmatpush2.msra.mxu0 0.0
        %1225 = vmatprep.subr.mxu0 0.0
        %1226 = vmatpush2.msra.mxu0 0.0
        %1227 = vmatprep.subr.mxu0 0.0
        %1228 = vmatpush2.msra.mxu0 0.0
        %1229 = vmatprep.subr.mxu0 0.0
        %1230 = vmatpush2.msra.mxu0 0.0
        %1231 = vmatprep.subr.mxu0 0.0
        %1232 = vmatpush2.msra.mxu0 0.0
        %1233 = vmatprep.subr.mxu0 0.0
        %1234 = vmatpush2.msra.mxu0 0.0
        %1235 = vmatprep.subr.mxu0 0.0
        %1236 = vmatpush2.msra.mxu0 0.0
        %1237 = vmatprep.subr.mxu0 0.0
        %1238 = vmatpush2.msra.mxu0 0.0
        %1239 = vmatprep.subr.mxu0 0.0
        %1240 = vmatpush2.msra.mxu0 0.0
        %1241 = vmatprep.subr.mxu0 0.0
        %1242 = vmatpush2.msra.mxu0 0.0
        %1243 = vmatprep.subr.mxu0 0.0
        %1244 = vmatpush2.msra.mxu0 0.0
        %1245 = vmatprep.subr.mxu0 0.0
        %1246 = vmatpush2.msra.mxu0 0.0
        %1247 = vmatprep.subr.mxu0 0.0
        %1248 = vmatpush2.msra.mxu0 0.0
        %1249 = vmatprep.subr.mxu0 0.0
        %1250 = vmatpush2.msra.mxu0 0.0
        %1251 = vmatprep.subr.mxu0 0.0
        %1252 = vmatpush2.msra.mxu0 0.0
        %1253 = vmatprep.subr.mxu0 0.0
        %1254 = vmatpush2.msra.mxu0 0.0
        %1255 = vmatprep.mubr.f32.mxu0 0.0
        %1256 = vmatmul.mubr.f32.gmra.mxu0 %v1189
        %v1257 = vpop.f32.mrf.mxu0
        %v1258 = vadd.f32 0.0, %v1257
        %v1259 = vpop.f32.mrf.mxu0
        %1260 = vdwg.mxu0
        %v1262 = vsel %vm330, %v1258, 0
        %1264 = vmatprep.subr.mxu0 0.0
        %1265 = vmatpush1.msra.mxu0 0.0
        %1266 = vmatprep.subr.mxu0 0.0
        %1267 = vmatpush1.msra.mxu0 0.0
        %1268 = vmatprep.subr.mxu0 0.0
        %1269 = vmatpush1.msra.mxu0 0.0
        %1270 = vmatprep.subr.mxu0 0.0
        %1271 = vmatpush1.msra.mxu0 0.0
        %1272 = vmatprep.subr.mxu0 0.0
        %1273 = vmatpush1.msra.mxu0 0.0
        %1274 = vmatprep.subr.mxu0 0.0
        %1275 = vmatpush1.msra.mxu0 0.0
        %1276 = vmatprep.subr.mxu0 0.0
        %1277 = vmatpush1.msra.mxu0 0.0
        %1278 = vmatprep.subr.mxu0 0.0
        %1279 = vmatpush1.msra.mxu0 0.0
        %1280 = vmatprep.subr.mxu0 0.0
        %1281 = vmatpush1.msra.mxu0 0.0
        %1282 = vmatprep.subr.mxu0 0.0
        %1283 = vmatpush1.msra.mxu0 0.0
        %1284 = vmatprep.subr.mxu0 0.0
        %1285 = vmatpush1.msra.mxu0 0.0
        %1286 = vmatprep.subr.mxu0 0.0
        %1287 = vmatpush1.msra.mxu0 0.0
        %1288 = vmatprep.subr.mxu0 0.0
        %1289 = vmatpush1.msra.mxu0 %v316
        %1290 = vmatprep.subr.mxu0 0.0
        %1291 = vmatpush1.msra.mxu0 %v315
        %1292 = vmatprep.subr.mxu0 0.0
        %1293 = vmatpush1.msra.mxu0 %v314
        %1294 = vmatprep.subr.mxu0 0.0
        %1295 = vmatpush1.msra.mxu0 %v313
        %1296 = vmatprep.subr.mxu0 0.0
        %1297 = vmatpush2.msra.mxu0 0.0
        %1298 = vmatprep.subr.mxu0 0.0
        %1299 = vmatpush2.msra.mxu0 0.0
        %1300 = vmatprep.subr.mxu0 0.0
        %1301 = vmatpush2.msra.mxu0 0.0
        %1302 = vmatprep.subr.mxu0 0.0
        %1303 = vmatpush2.msra.mxu0 0.0
        %1304 = vmatprep.subr.mxu0 0.0
        %1305 = vmatpush2.msra.mxu0 0.0
        %1306 = vmatprep.subr.mxu0 0.0
        %1307 = vmatpush2.msra.mxu0 0.0
        %1308 = vmatprep.subr.mxu0 0.0
        %1309 = vmatpush2.msra.mxu0 0.0
        %1310 = vmatprep.subr.mxu0 0.0
        %1311 = vmatpush2.msra.mxu0 0.0
        %1312 = vmatprep.subr.mxu0 0.0
        %1313 = vmatpush2.msra.mxu0 0.0
        %1314 = vmatprep.subr.mxu0 0.0
        %1315 = vmatpush2.msra.mxu0 0.0
        %1316 = vmatprep.subr.mxu0 0.0
        %1317 = vmatpush2.msra.mxu0 0.0
        %1318 = vmatprep.subr.mxu0 0.0
        %1319 = vmatpush2.msra.mxu0 0.0
        %1320 = vmatprep.subr.mxu0 0.0
        %1321 = vmatpush2.msra.mxu0 0.0
        %1322 = vmatprep.subr.mxu0 0.0
        %1323 = vmatpush2.msra.mxu0 0.0
        %1324 = vmatprep.subr.mxu0 0.0
        %1325 = vmatpush2.msra.mxu0 0.0
        %1326 = vmatprep.subr.mxu0 0.0
        %1327 = vmatpush2.msra.mxu0 0.0
        %1328 = vmatprep.mubr.f32.mxu0 0.0
        %1329 = vmatmul.mubr.f32.gmra.mxu0 %v1262
        %v1330 = vpop.f32.mrf.mxu0
        %v1331 = vadd.f32 0.0, %v1330
        %v1332 = vpop.f32.mrf.mxu0
        %1333 = vdwg.mxu0
        %v1335 = vsel %vm330, %v1112, 0
        %1337 = vmatprep.subr.mxu0 0.0
        %1338 = vmatpush1.msra.mxu0 0.0
        %1339 = vmatprep.subr.mxu0 0.0
        %1340 = vmatpush1.msra.mxu0 0.0
        %1341 = vmatprep.subr.mxu0 0.0
        %1342 = vmatpush1.msra.mxu0 0.0
        %1343 = vmatprep.subr.mxu0 0.0
        %1344 = vmatpush1.msra.mxu0 0.0
        %1345 = vmatprep.subr.mxu0 0.0
        %1346 = vmatpush1.msra.mxu0 0.0
        %1347 = vmatprep.subr.mxu0 0.0
        %1348 = vmatpush1.msra.mxu0 0.0
        %1349 = vmatprep.subr.mxu0 0.0
        %1350 = vmatpush1.msra.mxu0 0.0
        %1351 = vmatprep.subr.mxu0 0.0
        %1352 = vmatpush1.msra.mxu0 0.0
        %1353 = vmatprep.subr.mxu0 0.0
        %1354 = vmatpush1.msra.mxu0 0.0
        %1355 = vmatprep.subr.mxu0 0.0
        %1356 = vmatpush1.msra.mxu0 0.0
        %1357 = vmatprep.subr.mxu0 0.0
        %1358 = vmatpush1.msra.mxu0 0.0
        %1359 = vmatprep.subr.mxu0 0.0
        %1360 = vmatpush1.msra.mxu0 0.0
        %1361 = vmatprep.subr.mxu0 0.0
        %1362 = vmatpush1.msra.mxu0 %v312
        %1363 = vmatprep.subr.mxu0 0.0
        %1364 = vmatpush1.msra.mxu0 %v311
        %1365 = vmatprep.subr.mxu0 0.0
        %1366 = vmatpush1.msra.mxu0 %v310
        %1367 = vmatprep.subr.mxu0 0.0
        %1368 = vmatpush1.msra.mxu0 %v309
        %1369 = vmatprep.subr.mxu0 0.0
        %1370 = vmatpush2.msra.mxu0 0.0
        %1371 = vmatprep.subr.mxu0 0.0
        %1372 = vmatpush2.msra.mxu0 0.0
        %1373 = vmatprep.subr.mxu0 0.0
        %1374 = vmatpush2.msra.mxu0 0.0
        %1375 = vmatprep.subr.mxu0 0.0
        %1376 = vmatpush2.msra.mxu0 0.0
        %1377 = vmatprep.subr.mxu0 0.0
        %1378 = vmatpush2.msra.mxu0 0.0
        %1379 = vmatprep.subr.mxu0 0.0
        %1380 = vmatpush2.msra.mxu0 0.0
        %1381 = vmatprep.subr.mxu0 0.0
        %1382 = vmatpush2.msra.mxu0 0.0
        %1383 = vmatprep.subr.mxu0 0.0
        %1384 = vmatpush2.msra.mxu0 0.0
        %1385 = vmatprep.subr.mxu0 0.0
        %1386 = vmatpush2.msra.mxu0 0.0
        %1387 = vmatprep.subr.mxu0 0.0
        %1388 = vmatpush2.msra.mxu0 0.0
        %1389 = vmatprep.subr.mxu0 0.0
        %1390 = vmatpush2.msra.mxu0 0.0
        %1391 = vmatprep.subr.mxu0 0.0
        %1392 = vmatpush2.msra.mxu0 0.0
        %1393 = vmatprep.subr.mxu0 0.0
        %1394 = vmatpush2.msra.mxu0 0.0
        %1395 = vmatprep.subr.mxu0 0.0
        %1396 = vmatpush2.msra.mxu0 0.0
        %1397 = vmatprep.subr.mxu0 0.0
        %1398 = vmatpush2.msra.mxu0 0.0
        %1399 = vmatprep.subr.mxu0 0.0
        %1400 = vmatpush2.msra.mxu0 0.0
        %1401 = vmatprep.mubr.f32.mxu0 0.0
        %1402 = vmatmul.mubr.f32.gmra.mxu0 %v1335
        %v1403 = vpop.f32.mrf.mxu0
        %v1404 = vadd.f32 %v1331, %v1403
        %v1405 = vpop.f32.mrf.mxu0
        %1406 = vdwg.mxu0
        %v1407 = vlaneseq
        %v1408 = vshrl.u32 %v1407, 7
        %v1409 = vsub.s32 0, %v1408
        %v1410 = vrot.slane %v320, %v1409
        %v1411 = vadd.f32 %v1404, %v1410
        %v1412 = vmax.f32 %v1411, 0.0
        %v1413 = vlaneseq
        %v1414 = vshrl.u32 %v1413, 7
        %v1415 = vsub.s32 0, %v1414
        %v1416 = vrot.slane %v325, %v1415
        %v1418 = vsel %vm330, %v1412, 0
        %1420 = vmatprep.subr.mxu0 0.0
        %1421 = vmatpush1.msra.mxu0 0.0
        %1422 = vmatprep.subr.mxu0 0.0
        %1423 = vmatpush1.msra.mxu0 0.0
        %1424 = vmatprep.subr.mxu0 0.0
        %1425 = vmatpush1.msra.mxu0 0.0
        %1426 = vmatprep.subr.mxu0 0.0
        %1427 = vmatpush1.msra.mxu0 0.0
        %1428 = vmatprep.subr.mxu0 0.0
        %1429 = vmatpush1.msra.mxu0 0.0
        %1430 = vmatprep.subr.mxu0 0.0
        %1431 = vmatpush1.msra.mxu0 0.0
        %1432 = vmatprep.subr.mxu0 0.0
        %1433 = vmatpush1.msra.mxu0 0.0
        %1434 = vmatprep.subr.mxu0 0.0
        %1435 = vmatpush1.msra.mxu0 0.0
        %1436 = vmatprep.subr.mxu0 0.0
        %1437 = vmatpush1.msra.mxu0 0.0
        %1438 = vmatprep.subr.mxu0 0.0
        %1439 = vmatpush1.msra.mxu0 0.0
        %1440 = vmatprep.subr.mxu0 0.0
        %1441 = vmatpush1.msra.mxu0 0.0
        %1442 = vmatprep.subr.mxu0 0.0
        %1443 = vmatpush1.msra.mxu0 0.0
        %1444 = vmatprep.subr.mxu0 0.0
        %1445 = vmatpush1.msra.mxu0 %v324
        %1446 = vmatprep.subr.mxu0 0.0
        %1447 = vmatpush1.msra.mxu0 %v323
        %1448 = vmatprep.subr.mxu0 0.0
        %1449 = vmatpush1.msra.mxu0 %v322
        %1450 = vmatprep.subr.mxu0 0.0
        %1451 = vmatpush1.msra.mxu0 %v321
        %1452 = vmatprep.subr.mxu0 0.0
        %1453 = vmatpush2.msra.mxu0 0.0
        %1454 = vmatprep.subr.mxu0 0.0
        %1455 = vmatpush2.msra.mxu0 0.0
        %1456 = vmatprep.subr.mxu0 0.0
        %1457 = vmatpush2.msra.mxu0 0.0
        %1458 = vmatprep.subr.mxu0 0.0
        %1459 = vmatpush2.msra.mxu0 0.0
        %1460 = vmatprep.subr.mxu0 0.0
        %1461 = vmatpush2.msra.mxu0 0.0
        %1462 = vmatprep.subr.mxu0 0.0
        %1463 = vmatpush2.msra.mxu0 0.0
        %1464 = vmatprep.subr.mxu0 0.0
        %1465 = vmatpush2.msra.mxu0 0.0
        %1466 = vmatprep.subr.mxu0 0.0
        %1467 = vmatpush2.msra.mxu0 0.0
        %1468 = vmatprep.subr.mxu0 0.0
        %1469 = vmatpush2.msra.mxu0 0.0
        %1470 = vmatprep.subr.mxu0 0.0
        %1471 = vmatpush2.msra.mxu0 0.0
        %1472 = vmatprep.subr.mxu0 0.0
        %1473 = vmatpush2.msra.mxu0 0.0
        %1474 = vmatprep.subr.mxu0 0.0
        %1475 = vmatpush2.msra.mxu0 0.0
        %1476 = vmatprep.subr.mxu0 0.0
        %1477 = vmatpush2.msra.mxu0 0.0
        %1478 = vmatprep.subr.mxu0 0.0
        %1479 = vmatpush2.msra.mxu0 0.0
        %1480 = vmatprep.subr.mxu0 0.0
        %1481 = vmatpush2.msra.mxu0 0.0
        %1482 = vmatprep.subr.mxu0 0.0
        %1483 = vmatpush2.msra.mxu0 0.0
        %1484 = vmatprep.mubr.f32.mxu0 0.0
        %1485 = vmatmul.mubr.f32.gmra.mxu0 %v1418
        %v1486 = vpop.f32.mrf.mxu0
        %v1487 = vadd.f32 %v1416, %v1486
        %v1488 = vpop.f32.mrf.mxu0
        %1489 = vdwg.mxu0
        %vm1490 = vcmask 1041408
        %v1491 = vsel %vm1490, %v1487, -inf
        %1492 = vmax.xlane.f32.xlu0 %v1491
        %v1493 = vpop.xlane.xlu0 %1492
        %v1494 = vsub.f32 %v1487, %v1493
        %v1495 = vmul.f32 %v1494, 1.442695
        %v1496 = vpow.pop %v1495
        %v1497 = vsel %vm1490, %v1496, 0.0
        %1498 = vadd.xlane.f32.xlu0 %v1497
        %v1499 = vpop.xlane.xlu0 %1498
        %v1500 = vlog2.pop %v1499
        %v1501 = vmul.f32 %v1500, 0.6931472
        %v1502 = vadd.f32 %v1501, %v1493
        %v1503 = vsub.f32 %v1487, %v1502
        %1504 = vst [vmem:[%s272] sm:$0x3] %v1503
        %s1505 = sand.u32 %s181, 1
        %s1506 = scalar_lea.sflag [#allocation3], %s1505
        %s1507 = sand.u32 %s181, 1
        %s1508 = smul.addr %s1507, 2
        %s1509 = scalar_lea.vmem [#allocation2], %s1508
        // Predicated region
        $region49: #{tpu_custom_call.1} parent=47 // pred_check
          %p1510 = pneg %p191
        $region50: #{tpu_custom_call.1} parent=47 // pred_check_branch
          %1512 = sbr.rel (%p1510) target = $region52
        $region51: #{tpu_custom_call.1} parent=47 // pred_region
          %s1514 = ssub.s32 32, 32
          %1515 = vsyncadd %s1506, %s1514
          %s1516 = smul.addr %s21, 32
          %s1517 = scalar_lea.hbm %s7, %s1516
          %s1519 = sshll.u32 %s1509, 4
          %s1520 = int_to_ptr.vmem [resolvable:$true] %s1519
          %1522 = dma.vmem_to_hbm [thread:$0]  %s1520, 32, %s1517, %s1506
        $region52: #{tpu_custom_call.1} parent=47 // pred_fallthru
          _
      $region48: #{tpu_custom_call.1} parent=5 // pred_fallthru
        _
      %p1523 = scmp.le.s32.totalorder 2, %s16
      // Predicated region
      $region53: #{tpu_custom_call.1} parent=5 // pred_check
        %p1524 = pneg %p1523
      $region54: #{tpu_custom_call.1} parent=5 // pred_check_branch
        %1526 = sbr.rel (%p1524) target = $region56
      $region55: #{tpu_custom_call.1} parent=5 // pred_region
        %s1527 = ssub.s32 %s16, 2
        // Predicated region
        $region57: #{tpu_custom_call.1} parent=55 // pred_check
          %p1528 = pneg %p197
        $region58: #{tpu_custom_call.1} parent=55 // pred_check_branch
          %1530 = sbr.rel (%p1528) target = $region60
        $region59: #{tpu_custom_call.1} parent=55 // pred_region
          %s1531 = sand.u32 %s182, 1
          %s1532 = scalar_lea.sflag [#allocation3], %s1531
          %s1533 = sand.u32 %s182, 1
          %s1534 = smul.addr %s1533, 2
          %s1535 = scalar_lea.vmem [#allocation2], %s1534
          %1536 = dma.done %s1532, 32
        $region60: #{tpu_custom_call.1} parent=55 // pred_fallthru
          _
      $region56: #{tpu_custom_call.1} parent=5 // pred_fallthru
        _
    $region6: #{tpu_custom_call.1} parent=1 // loop_footer
      %s20 = sadd.s32 1, %s16
    $region7: #{tpu_custom_call.1} parent=1 // loop_footer_branch
      %15 = sbr.rel target = $region3
    $region8: #{tpu_custom_call.1} parent=1 // loop_exit
      _
    %1537 = vsyncpa [#allocation3], 1
    %s1538 = scalar_lea.sflag [#allocation3], 1
    %1539 = vsyncpa %s1538, 1

</llo_original>
